<compile_context>
chip_gen: v7x
topology: tpu7x:2x2x1
jax: 0.10.0
libtpu: 0.0.40
codegen_flags: <defaults>
</compile_context>

<pallas_src>
import jax
import jax.numpy as jnp
from jax.experimental import pallas as pl
from jax.experimental.pallas import tpu as pltpu


# ---- packed-parameter layout (PyTorch nn.Linear layout: weight is (out, in))
_IN = 2       # input features
_H = 10       # hidden width of layer1 / layer2
_W1, _B1 = 0, 20          # w1: (10, 2) -> 20 floats, b1: 10 floats
_W2, _B2 = 30, 130        # w2: (10,10) -> 100 floats, b2: 10 floats
_W3, _B3 = 140, 150       # w3: (1, 10) -> 10 floats, b3: 1 float
_NPARAMS = 151

_SUB = 8        # sublanes per chunk
_LANES = 128    # lanes per chunk
_CHUNK = _SUB * _LANES   # one (8,128) f32 vreg = 1024 batch rows


def moon_mlp_kernel(p_ref, x_ref, o_ref):
    """Forward pass for one batch tile.

    p_ref: (151,) float32 in SMEM   -- all weights & biases, packed
    x_ref: (2, r_tile, 128) float32 -- batch-on-lanes input tile (VMEM)
    o_ref: (r_tile, 128)    float32 -- lane-dense output tile (VMEM)
    """
    # Hoist every scalar weight read out of the chunk loop: SMEM -> sregs,
    # once per grid step.
    w1 = [[p_ref[_W1 + j * _IN + k] for k in range(_IN)] for j in range(_H)]
    b1 = [p_ref[_B1 + j] for j in range(_H)]
    w2 = [[p_ref[_W2 + j * _H + k] for k in range(_H)] for j in range(_H)]
    b2 = [p_ref[_B2 + j] for j in range(_H)]
    w3 = [p_ref[_W3 + k] for k in range(_H)]
    b3 = p_ref[_B3]

    r_tile = o_ref.shape[0]          # static
    n_chunks = r_tile // _SUB        # static Python int -> fully unrolled

    for c in range(n_chunks):
        r = c * _SUB                     # static slice start
        x0 = x_ref[0, r:r + _SUB, :]     # (8, 128): 1024 rows, feature 0
        x1 = x_ref[1, r:r + _SUB, :]     # (8, 128): 1024 rows, feature 1

        # layer1 + ReLU: h1[j] = relu(w1[j,0]*x0 + w1[j,1]*x1 + b1[j])
        h1 = [jnp.maximum(w1[j][0] * x0 + w1[j][1] * x1 + b1[j], 0.0)
              for j in range(_H)]

        # layer2 + ReLU: h2[j] = relu(sum_k w2[j,k]*h1[k] + b2[j])
        h2 = []
        for j in range(_H):
            acc = w2[j][0] * h1[0] + b2[j]
            for k in range(1, _H):
                acc = acc + w2[j][k] * h1[k]
            h2.append(jnp.maximum(acc, 0.0))

        # layer3: out = sum_k w3[k]*h2[k] + b3
        out = w3[0] * h2[0] + b3
        for k in range(1, _H):
            out = out + w3[k] * h2[k]

        o_ref[r:r + _SUB, :] = out       # unmasked, lane-dense store


def pack_params(params):
    """Pack all weights/biases (151 floats) into one flat vector (lives in SMEM)."""
    flat = jnp.concatenate([
        params["w1"].reshape(-1), params["b1"].reshape(-1),
        params["w2"].reshape(-1), params["b2"].reshape(-1),
        params["w3"].reshape(-1), params["b3"].reshape(-1),
    ]).astype(jnp.float32)
    assert flat.shape[0] == _NPARAMS
    return flat


def moon_model_v0(x, params, *, block_rows=8192):
    """Pallas forward for MoonModelV0.

    x: (N, 2) float32
    params: dict with w1 (10,2), b1 (10,), w2 (10,10), b2 (10,), w3 (1,10),
            b3 (1,) in the PyTorch nn.Linear layout (out_features, in_features).
    block_rows: batch rows per grid step; multiple of 1024 (8 sublanes * 128 lanes).
    returns: (N, 1) float32
    """
    N, in_f = x.shape
    assert in_f == _IN
    assert block_rows % _CHUNK == 0 and block_rows > 0

    # Clamp the tile so a tiny batch doesn't pad all the way to block_rows.
    min_pad = pl.cdiv(N, _CHUNK) * _CHUNK
    block_rows = min(block_rows, min_pad)

    # Pad the batch up to a whole number of tiles (handles any N).
    n_pad = pl.cdiv(N, block_rows) * block_rows
    x_pad = jnp.pad(x.astype(jnp.float32), ((0, n_pad - N), (0, 0)))

    # Batch-on-lanes, sublane-dense layout: (features, rows/128, 128).
    r_total = n_pad // _LANES
    xt = x_pad.T.reshape(_IN, r_total, _LANES)

    p = pack_params(params)

    r_tile = block_rows // _LANES
    grid = (r_total // r_tile,)

    out2d = pl.pallas_call(
        moon_mlp_kernel,
        out_shape=jax.ShapeDtypeStruct((r_total, _LANES), jnp.float32),
        grid_spec=pltpu.PrefetchScalarGridSpec(
            num_scalar_prefetch=0,
            grid=grid,
            in_specs=[
                # single packed parameter vector, resident in SMEM
                pl.BlockSpec(memory_space=pltpu.MemorySpace.SMEM),
                # batch tile of the transposed input
                pl.BlockSpec((_IN, r_tile, _LANES), lambda i: (0, i, 0)),
            ],
            out_specs=pl.BlockSpec((r_tile, _LANES), lambda i: (i, 0)),
        ),
        compiler_params=pltpu.CompilerParams(
            dimension_semantics=("parallel",),
        ),
    )(p, xt)

    # Back to the PyTorch output layout, dropping the padded rows.
    return out2d.reshape(n_pad, 1)[:N]


def init_params(key):
    """nn.Linear-style init: U(-1/sqrt(fan_in), 1/sqrt(fan_in)).

    Weights are stored in the PyTorch layout (out_features, in_features).
    """
    dims = [(2, 10), (10, 10), (10, 1)]
    params = {}
    keys = jax.random.split(key, 2 * len(dims))
    for idx, (fan_in, fan_out) in enumerate(dims):
        bound = 1.0 / (float(fan_in) ** 0.5)
        wk, bk = keys[2 * idx], keys[2 * idx + 1]
        params[f"w{idx + 1}"] = jax.random.uniform(
            wk, (fan_out, fan_in), jnp.float32, -bound, bound)
        params[f"b{idx + 1}"] = jax.random.uniform(
            bk, (fan_out,), jnp.float32, -bound, bound)
    return params


def moon_model_v0_ref(x, params):
    """Pure-JAX reference (matches the PyTorch module exactly)."""
    h1 = jnp.maximum(x @ params["w1"].T + params["b1"], 0.0)
    h2 = jnp.maximum(h1 @ params["w2"].T + params["b2"], 0.0)
    return h2 @ params["w3"].T + params["b3"]


if __name__ == "__main__":
    key = jax.random.PRNGKey(0)
    pkey, xkey = jax.random.split(key)

    params = init_params(pkey)

    # Small batch, not a multiple of the tile -> exercises padding + 2 grid steps.
    N = 1500
    x = jax.random.normal(xkey, (N, 2), dtype=jnp.float32)

    out = moon_model_v0(x, params, block_rows=1024)
    out = jax.block_until_ready(out)
    ref = moon_model_v0_ref(x, params)
    assert out.shape == (N, 1), out.shape
    assert jnp.allclose(out, ref, atol=1e-4, rtol=1e-4), \
        float(jnp.max(jnp.abs(out - ref)))

    # Tiny batch with default (clamped) tile -> single grid step, heavy padding path.
    x_small = jax.random.normal(jax.random.PRNGKey(1), (8, 2), dtype=jnp.float32)
    out_small = jax.block_until_ready(moon_model_v0(x_small, params))
    ref_small = moon_model_v0_ref(x_small, params)
    assert out_small.shape == (8, 1), out_small.shape
    assert jnp.allclose(out_small, ref_small, atol=1e-4, rtol=1e-4), \
        float(jnp.max(jnp.abs(out_small - ref_small)))

    print("KERNEL_OK")
</pallas_src>

<mosaic_0001>
module attributes {stable_mosaic.version = 11 : i64} {
  func.func @moon_mlp_kernel(%arg0: i32, %arg1: memref<151xf32, #tpu.memory_space<smem>>, %arg2: memref<2x8x128xf32, #tpu.memory_space<vmem>>, %arg3: memref<8x128xf32, #tpu.memory_space<vmem>>) attributes {dimension_semantics = [#tpu.dimension_semantics<parallel>], iteration_bounds = array<i64: 2>, scalar_prefetch = 0 : i64, scratch_operands = 0 : i64, tpu.core_type = #tpu.core_type<tc>, window_params = [{transform_indices = @transform_0, window_bounds = array<i64: 151>}, {transform_indices = @transform_1, window_bounds = array<i64: 2, 8, 128>}, {transform_indices = @transform_2, window_bounds = array<i64: 8, 128>}]} {
    %c0 = arith.constant 0 : index
    %0 = memref.load %arg1[%c0] : memref<151xf32, #tpu.memory_space<smem>>
    %c1 = arith.constant 1 : index
    %1 = memref.load %arg1[%c1] : memref<151xf32, #tpu.memory_space<smem>>
    %c2 = arith.constant 2 : index
    %2 = memref.load %arg1[%c2] : memref<151xf32, #tpu.memory_space<smem>>
    %c3 = arith.constant 3 : index
    %3 = memref.load %arg1[%c3] : memref<151xf32, #tpu.memory_space<smem>>
    %c4 = arith.constant 4 : index
    %4 = memref.load %arg1[%c4] : memref<151xf32, #tpu.memory_space<smem>>
    %c5 = arith.constant 5 : index
    %5 = memref.load %arg1[%c5] : memref<151xf32, #tpu.memory_space<smem>>
    %c6 = arith.constant 6 : index
    %6 = memref.load %arg1[%c6] : memref<151xf32, #tpu.memory_space<smem>>
    %c7 = arith.constant 7 : index
    %7 = memref.load %arg1[%c7] : memref<151xf32, #tpu.memory_space<smem>>
    %c8 = arith.constant 8 : index
    %8 = memref.load %arg1[%c8] : memref<151xf32, #tpu.memory_space<smem>>
    %c9 = arith.constant 9 : index
    %9 = memref.load %arg1[%c9] : memref<151xf32, #tpu.memory_space<smem>>
    %c10 = arith.constant 10 : index
    %10 = memref.load %arg1[%c10] : memref<151xf32, #tpu.memory_space<smem>>
    %c11 = arith.constant 11 : index
    %11 = memref.load %arg1[%c11] : memref<151xf32, #tpu.memory_space<smem>>
    %c12 = arith.constant 12 : index
    %12 = memref.load %arg1[%c12] : memref<151xf32, #tpu.memory_space<smem>>
    %c13 = arith.constant 13 : index
    %13 = memref.load %arg1[%c13] : memref<151xf32, #tpu.memory_space<smem>>
    %c14 = arith.constant 14 : index
    %14 = memref.load %arg1[%c14] : memref<151xf32, #tpu.memory_space<smem>>
    %c15 = arith.constant 15 : index
    %15 = memref.load %arg1[%c15] : memref<151xf32, #tpu.memory_space<smem>>
    %c16 = arith.constant 16 : index
    %16 = memref.load %arg1[%c16] : memref<151xf32, #tpu.memory_space<smem>>
    %c17 = arith.constant 17 : index
    %17 = memref.load %arg1[%c17] : memref<151xf32, #tpu.memory_space<smem>>
    %c18 = arith.constant 18 : index
    %18 = memref.load %arg1[%c18] : memref<151xf32, #tpu.memory_space<smem>>
    %c19 = arith.constant 19 : index
    %19 = memref.load %arg1[%c19] : memref<151xf32, #tpu.memory_space<smem>>
    %c20 = arith.constant 20 : index
    %20 = memref.load %arg1[%c20] : memref<151xf32, #tpu.memory_space<smem>>
    %c21 = arith.constant 21 : index
    %21 = memref.load %arg1[%c21] : memref<151xf32, #tpu.memory_space<smem>>
    %c22 = arith.constant 22 : index
    %22 = memref.load %arg1[%c22] : memref<151xf32, #tpu.memory_space<smem>>
    %c23 = arith.constant 23 : index
    %23 = memref.load %arg1[%c23] : memref<151xf32, #tpu.memory_space<smem>>
    %c24 = arith.constant 24 : index
    %24 = memref.load %arg1[%c24] : memref<151xf32, #tpu.memory_space<smem>>
    %c25 = arith.constant 25 : index
    %25 = memref.load %arg1[%c25] : memref<151xf32, #tpu.memory_space<smem>>
    %c26 = arith.constant 26 : index
    %26 = memref.load %arg1[%c26] : memref<151xf32, #tpu.memory_space<smem>>
    %c27 = arith.constant 27 : index
    %27 = memref.load %arg1[%c27] : memref<151xf32, #tpu.memory_space<smem>>
    %c28 = arith.constant 28 : index
    %28 = memref.load %arg1[%c28] : memref<151xf32, #tpu.memory_space<smem>>
    %c29 = arith.constant 29 : index
    %29 = memref.load %arg1[%c29] : memref<151xf32, #tpu.memory_space<smem>>
    %c30 = arith.constant 30 : index
    %30 = memref.load %arg1[%c30] : memref<151xf32, #tpu.memory_space<smem>>
    %c31 = arith.constant 31 : index
    %31 = memref.load %arg1[%c31] : memref<151xf32, #tpu.memory_space<smem>>
    %c32 = arith.constant 32 : index
    %32 = memref.load %arg1[%c32] : memref<151xf32, #tpu.memory_space<smem>>
    %c33 = arith.constant 33 : index
    %33 = memref.load %arg1[%c33] : memref<151xf32, #tpu.memory_space<smem>>
    %c34 = arith.constant 34 : index
    %34 = memref.load %arg1[%c34] : memref<151xf32, #tpu.memory_space<smem>>
    %c35 = arith.constant 35 : index
    %35 = memref.load %arg1[%c35] : memref<151xf32, #tpu.memory_space<smem>>
    %c36 = arith.constant 36 : index
    %36 = memref.load %arg1[%c36] : memref<151xf32, #tpu.memory_space<smem>>
    %c37 = arith.constant 37 : index
    %37 = memref.load %arg1[%c37] : memref<151xf32, #tpu.memory_space<smem>>
    %c38 = arith.constant 38 : index
    %38 = memref.load %arg1[%c38] : memref<151xf32, #tpu.memory_space<smem>>
    %c39 = arith.constant 39 : index
    %39 = memref.load %arg1[%c39] : memref<151xf32, #tpu.memory_space<smem>>
    %c40 = arith.constant 40 : index
    %40 = memref.load %arg1[%c40] : memref<151xf32, #tpu.memory_space<smem>>
    %c41 = arith.constant 41 : index
    %41 = memref.load %arg1[%c41] : memref<151xf32, #tpu.memory_space<smem>>
    %c42 = arith.constant 42 : index
    %42 = memref.load %arg1[%c42] : memref<151xf32, #tpu.memory_space<smem>>
    %c43 = arith.constant 43 : index
    %43 = memref.load %arg1[%c43] : memref<151xf32, #tpu.memory_space<smem>>
    %c44 = arith.constant 44 : index
    %44 = memref.load %arg1[%c44] : memref<151xf32, #tpu.memory_space<smem>>
    %c45 = arith.constant 45 : index
    %45 = memref.load %arg1[%c45] : memref<151xf32, #tpu.memory_space<smem>>
    %c46 = arith.constant 46 : index
    %46 = memref.load %arg1[%c46] : memref<151xf32, #tpu.memory_space<smem>>
    %c47 = arith.constant 47 : index
    %47 = memref.load %arg1[%c47] : memref<151xf32, #tpu.memory_space<smem>>
    %c48 = arith.constant 48 : index
    %48 = memref.load %arg1[%c48] : memref<151xf32, #tpu.memory_space<smem>>
    %c49 = arith.constant 49 : index
    %49 = memref.load %arg1[%c49] : memref<151xf32, #tpu.memory_space<smem>>
    %c50 = arith.constant 50 : index
    %50 = memref.load %arg1[%c50] : memref<151xf32, #tpu.memory_space<smem>>
    %c51 = arith.constant 51 : index
    %51 = memref.load %arg1[%c51] : memref<151xf32, #tpu.memory_space<smem>>
    %c52 = arith.constant 52 : index
    %52 = memref.load %arg1[%c52] : memref<151xf32, #tpu.memory_space<smem>>
    %c53 = arith.constant 53 : index
    %53 = memref.load %arg1[%c53] : memref<151xf32, #tpu.memory_space<smem>>
    %c54 = arith.constant 54 : index
    %54 = memref.load %arg1[%c54] : memref<151xf32, #tpu.memory_space<smem>>
    %c55 = arith.constant 55 : index
    %55 = memref.load %arg1[%c55] : memref<151xf32, #tpu.memory_space<smem>>
    %c56 = arith.constant 56 : index
    %56 = memref.load %arg1[%c56] : memref<151xf32, #tpu.memory_space<smem>>
    %c57 = arith.constant 57 : index
    %57 = memref.load %arg1[%c57] : memref<151xf32, #tpu.memory_space<smem>>
    %c58 = arith.constant 58 : index
    %58 = memref.load %arg1[%c58] : memref<151xf32, #tpu.memory_space<smem>>
    %c59 = arith.constant 59 : index
    %59 = memref.load %arg1[%c59] : memref<151xf32, #tpu.memory_space<smem>>
    %c60 = arith.constant 60 : index
    %60 = memref.load %arg1[%c60] : memref<151xf32, #tpu.memory_space<smem>>
    %c61 = arith.constant 61 : index
    %61 = memref.load %arg1[%c61] : memref<151xf32, #tpu.memory_space<smem>>
    %c62 = arith.constant 62 : index
    %62 = memref.load %arg1[%c62] : memref<151xf32, #tpu.memory_space<smem>>
    %c63 = arith.constant 63 : index
    %63 = memref.load %arg1[%c63] : memref<151xf32, #tpu.memory_space<smem>>
    %c64 = arith.constant 64 : index
    %64 = memref.load %arg1[%c64] : memref<151xf32, #tpu.memory_space<smem>>
    %c65 = arith.constant 65 : index
    %65 = memref.load %arg1[%c65] : memref<151xf32, #tpu.memory_space<smem>>
    %c66 = arith.constant 66 : index
    %66 = memref.load %arg1[%c66] : memref<151xf32, #tpu.memory_space<smem>>
    %c67 = arith.constant 67 : index
    %67 = memref.load %arg1[%c67] : memref<151xf32, #tpu.memory_space<smem>>
    %c68 = arith.constant 68 : index
    %68 = memref.load %arg1[%c68] : memref<151xf32, #tpu.memory_space<smem>>
    %c69 = arith.constant 69 : index
    %69 = memref.load %arg1[%c69] : memref<151xf32, #tpu.memory_space<smem>>
    %c70 = arith.constant 70 : index
    %70 = memref.load %arg1[%c70] : memref<151xf32, #tpu.memory_space<smem>>
    %c71 = arith.constant 71 : index
    %71 = memref.load %arg1[%c71] : memref<151xf32, #tpu.memory_space<smem>>
    %c72 = arith.constant 72 : index
    %72 = memref.load %arg1[%c72] : memref<151xf32, #tpu.memory_space<smem>>
    %c73 = arith.constant 73 : index
    %73 = memref.load %arg1[%c73] : memref<151xf32, #tpu.memory_space<smem>>
    %c74 = arith.constant 74 : index
    %74 = memref.load %arg1[%c74] : memref<151xf32, #tpu.memory_space<smem>>
    %c75 = arith.constant 75 : index
    %75 = memref.load %arg1[%c75] : memref<151xf32, #tpu.memory_space<smem>>
    %c76 = arith.constant 76 : index
    %76 = memref.load %arg1[%c76] : memref<151xf32, #tpu.memory_space<smem>>
    %c77 = arith.constant 77 : index
    %77 = memref.load %arg1[%c77] : memref<151xf32, #tpu.memory_space<smem>>
    %c78 = arith.constant 78 : index
    %78 = memref.load %arg1[%c78] : memref<151xf32, #tpu.memory_space<smem>>
    %c79 = arith.constant 79 : index
    %79 = memref.load %arg1[%c79] : memref<151xf32, #tpu.memory_space<smem>>
    %c80 = arith.constant 80 : index
    %80 = memref.load %arg1[%c80] : memref<151xf32, #tpu.memory_space<smem>>
    %c81 = arith.constant 81 : index
    %81 = memref.load %arg1[%c81] : memref<151xf32, #tpu.memory_space<smem>>
    %c82 = arith.constant 82 : index
    %82 = memref.load %arg1[%c82] : memref<151xf32, #tpu.memory_space<smem>>
    %c83 = arith.constant 83 : index
    %83 = memref.load %arg1[%c83] : memref<151xf32, #tpu.memory_space<smem>>
    %c84 = arith.constant 84 : index
    %84 = memref.load %arg1[%c84] : memref<151xf32, #tpu.memory_space<smem>>
    %c85 = arith.constant 85 : index
    %85 = memref.load %arg1[%c85] : memref<151xf32, #tpu.memory_space<smem>>
    %c86 = arith.constant 86 : index
    %86 = memref.load %arg1[%c86] : memref<151xf32, #tpu.memory_space<smem>>
    %c87 = arith.constant 87 : index
    %87 = memref.load %arg1[%c87] : memref<151xf32, #tpu.memory_space<smem>>
    %c88 = arith.constant 88 : index
    %88 = memref.load %arg1[%c88] : memref<151xf32, #tpu.memory_space<smem>>
    %c89 = arith.constant 89 : index
    %89 = memref.load %arg1[%c89] : memref<151xf32, #tpu.memory_space<smem>>
    %c90 = arith.constant 90 : index
    %90 = memref.load %arg1[%c90] : memref<151xf32, #tpu.memory_space<smem>>
    %c91 = arith.constant 91 : index
    %91 = memref.load %arg1[%c91] : memref<151xf32, #tpu.memory_space<smem>>
    %c92 = arith.constant 92 : index
    %92 = memref.load %arg1[%c92] : memref<151xf32, #tpu.memory_space<smem>>
    %c93 = arith.constant 93 : index
    %93 = memref.load %arg1[%c93] : memref<151xf32, #tpu.memory_space<smem>>
    %c94 = arith.constant 94 : index
    %94 = memref.load %arg1[%c94] : memref<151xf32, #tpu.memory_space<smem>>
    %c95 = arith.constant 95 : index
    %95 = memref.load %arg1[%c95] : memref<151xf32, #tpu.memory_space<smem>>
    %c96 = arith.constant 96 : index
    %96 = memref.load %arg1[%c96] : memref<151xf32, #tpu.memory_space<smem>>
    %c97 = arith.constant 97 : index
    %97 = memref.load %arg1[%c97] : memref<151xf32, #tpu.memory_space<smem>>
    %c98 = arith.constant 98 : index
    %98 = memref.load %arg1[%c98] : memref<151xf32, #tpu.memory_space<smem>>
    %c99 = arith.constant 99 : index
    %99 = memref.load %arg1[%c99] : memref<151xf32, #tpu.memory_space<smem>>
    %c100 = arith.constant 100 : index
    %100 = memref.load %arg1[%c100] : memref<151xf32, #tpu.memory_space<smem>>
    %c101 = arith.constant 101 : index
    %101 = memref.load %arg1[%c101] : memref<151xf32, #tpu.memory_space<smem>>
    %c102 = arith.constant 102 : index
    %102 = memref.load %arg1[%c102] : memref<151xf32, #tpu.memory_space<smem>>
    %c103 = arith.constant 103 : index
    %103 = memref.load %arg1[%c103] : memref<151xf32, #tpu.memory_space<smem>>
    %c104 = arith.constant 104 : index
    %104 = memref.load %arg1[%c104] : memref<151xf32, #tpu.memory_space<smem>>
    %c105 = arith.constant 105 : index
    %105 = memref.load %arg1[%c105] : memref<151xf32, #tpu.memory_space<smem>>
    %c106 = arith.constant 106 : index
    %106 = memref.load %arg1[%c106] : memref<151xf32, #tpu.memory_space<smem>>
    %c107 = arith.constant 107 : index
    %107 = memref.load %arg1[%c107] : memref<151xf32, #tpu.memory_space<smem>>
    %c108 = arith.constant 108 : index
    %108 = memref.load %arg1[%c108] : memref<151xf32, #tpu.memory_space<smem>>
    %c109 = arith.constant 109 : index
    %109 = memref.load %arg1[%c109] : memref<151xf32, #tpu.memory_space<smem>>
    %c110 = arith.constant 110 : index
    %110 = memref.load %arg1[%c110] : memref<151xf32, #tpu.memory_space<smem>>
    %c111 = arith.constant 111 : index
    %111 = memref.load %arg1[%c111] : memref<151xf32, #tpu.memory_space<smem>>
    %c112 = arith.constant 112 : index
    %112 = memref.load %arg1[%c112] : memref<151xf32, #tpu.memory_space<smem>>
    %c113 = arith.constant 113 : index
    %113 = memref.load %arg1[%c113] : memref<151xf32, #tpu.memory_space<smem>>
    %c114 = arith.constant 114 : index
    %114 = memref.load %arg1[%c114] : memref<151xf32, #tpu.memory_space<smem>>
    %c115 = arith.constant 115 : index
    %115 = memref.load %arg1[%c115] : memref<151xf32, #tpu.memory_space<smem>>
    %c116 = arith.constant 116 : index
    %116 = memref.load %arg1[%c116] : memref<151xf32, #tpu.memory_space<smem>>
    %c117 = arith.constant 117 : index
    %117 = memref.load %arg1[%c117] : memref<151xf32, #tpu.memory_space<smem>>
    %c118 = arith.constant 118 : index
    %118 = memref.load %arg1[%c118] : memref<151xf32, #tpu.memory_space<smem>>
    %c119 = arith.constant 119 : index
    %119 = memref.load %arg1[%c119] : memref<151xf32, #tpu.memory_space<smem>>
    %c120 = arith.constant 120 : index
    %120 = memref.load %arg1[%c120] : memref<151xf32, #tpu.memory_space<smem>>
    %c121 = arith.constant 121 : index
    %121 = memref.load %arg1[%c121] : memref<151xf32, #tpu.memory_space<smem>>
    %c122 = arith.constant 122 : index
    %122 = memref.load %arg1[%c122] : memref<151xf32, #tpu.memory_space<smem>>
    %c123 = arith.constant 123 : index
    %123 = memref.load %arg1[%c123] : memref<151xf32, #tpu.memory_space<smem>>
    %c124 = arith.constant 124 : index
    %124 = memref.load %arg1[%c124] : memref<151xf32, #tpu.memory_space<smem>>
    %c125 = arith.constant 125 : index
    %125 = memref.load %arg1[%c125] : memref<151xf32, #tpu.memory_space<smem>>
    %c126 = arith.constant 126 : index
    %126 = memref.load %arg1[%c126] : memref<151xf32, #tpu.memory_space<smem>>
    %c127 = arith.constant 127 : index
    %127 = memref.load %arg1[%c127] : memref<151xf32, #tpu.memory_space<smem>>
    %c128 = arith.constant 128 : index
    %128 = memref.load %arg1[%c128] : memref<151xf32, #tpu.memory_space<smem>>
    %c129 = arith.constant 129 : index
    %129 = memref.load %arg1[%c129] : memref<151xf32, #tpu.memory_space<smem>>
    %c130 = arith.constant 130 : index
    %130 = memref.load %arg1[%c130] : memref<151xf32, #tpu.memory_space<smem>>
    %c131 = arith.constant 131 : index
    %131 = memref.load %arg1[%c131] : memref<151xf32, #tpu.memory_space<smem>>
    %c132 = arith.constant 132 : index
    %132 = memref.load %arg1[%c132] : memref<151xf32, #tpu.memory_space<smem>>
    %c133 = arith.constant 133 : index
    %133 = memref.load %arg1[%c133] : memref<151xf32, #tpu.memory_space<smem>>
    %c134 = arith.constant 134 : index
    %134 = memref.load %arg1[%c134] : memref<151xf32, #tpu.memory_space<smem>>
    %c135 = arith.constant 135 : index
    %135 = memref.load %arg1[%c135] : memref<151xf32, #tpu.memory_space<smem>>
    %c136 = arith.constant 136 : index
    %136 = memref.load %arg1[%c136] : memref<151xf32, #tpu.memory_space<smem>>
    %c137 = arith.constant 137 : index
    %137 = memref.load %arg1[%c137] : memref<151xf32, #tpu.memory_space<smem>>
    %c138 = arith.constant 138 : index
    %138 = memref.load %arg1[%c138] : memref<151xf32, #tpu.memory_space<smem>>
    %c139 = arith.constant 139 : index
    %139 = memref.load %arg1[%c139] : memref<151xf32, #tpu.memory_space<smem>>
    %c140 = arith.constant 140 : index
    %140 = memref.load %arg1[%c140] : memref<151xf32, #tpu.memory_space<smem>>
    %c141 = arith.constant 141 : index
    %141 = memref.load %arg1[%c141] : memref<151xf32, #tpu.memory_space<smem>>
    %c142 = arith.constant 142 : index
    %142 = memref.load %arg1[%c142] : memref<151xf32, #tpu.memory_space<smem>>
    %c143 = arith.constant 143 : index
    %143 = memref.load %arg1[%c143] : memref<151xf32, #tpu.memory_space<smem>>
    %c144 = arith.constant 144 : index
    %144 = memref.load %arg1[%c144] : memref<151xf32, #tpu.memory_space<smem>>
    %c145 = arith.constant 145 : index
    %145 = memref.load %arg1[%c145] : memref<151xf32, #tpu.memory_space<smem>>
    %c146 = arith.constant 146 : index
    %146 = memref.load %arg1[%c146] : memref<151xf32, #tpu.memory_space<smem>>
    %c147 = arith.constant 147 : index
    %147 = memref.load %arg1[%c147] : memref<151xf32, #tpu.memory_space<smem>>
    %c148 = arith.constant 148 : index
    %148 = memref.load %arg1[%c148] : memref<151xf32, #tpu.memory_space<smem>>
    %c149 = arith.constant 149 : index
    %149 = memref.load %arg1[%c149] : memref<151xf32, #tpu.memory_space<smem>>
    %c150 = arith.constant 150 : index
    %150 = memref.load %arg1[%c150] : memref<151xf32, #tpu.memory_space<smem>>
    %c0_0 = arith.constant 0 : index
    %c0_1 = arith.constant 0 : index
    %c0_2 = arith.constant 0 : index
    %151 = vector.load %arg2[%c0_0, %c0_1, %c0_2] : memref<2x8x128xf32, #tpu.memory_space<vmem>>, vector<1x8x128xf32>
    %152 = vector.shape_cast %151 : vector<1x8x128xf32> to vector<8x128xf32>
    %c1_3 = arith.constant 1 : index
    %c0_4 = arith.constant 0 : index
    %c0_5 = arith.constant 0 : index
    %153 = vector.load %arg2[%c1_3, %c0_4, %c0_5] : memref<2x8x128xf32, #tpu.memory_space<vmem>>, vector<1x8x128xf32>
    %154 = vector.shape_cast %153 : vector<1x8x128xf32> to vector<8x128xf32>
    %155 = vector.broadcast %0 : f32 to vector<8x128xf32>
    %156 = arith.mulf %155, %152 : vector<8x128xf32>
    %157 = vector.broadcast %1 : f32 to vector<8x128xf32>
    %158 = arith.mulf %157, %154 : vector<8x128xf32>
    %159 = arith.addf %156, %158 : vector<8x128xf32>
    %160 = vector.broadcast %20 : f32 to vector<8x128xf32>
    %161 = arith.addf %159, %160 : vector<8x128xf32>
    %cst = arith.constant 0.000000e+00 : f32
    %162 = vector.broadcast %cst : f32 to vector<8x128xf32>
    %163 = arith.maximumf %161, %162 : vector<8x128xf32>
    %164 = vector.broadcast %2 : f32 to vector<8x128xf32>
    %165 = arith.mulf %164, %152 : vector<8x128xf32>
    %166 = vector.broadcast %3 : f32 to vector<8x128xf32>
    %167 = arith.mulf %166, %154 : vector<8x128xf32>
    %168 = arith.addf %165, %167 : vector<8x128xf32>
    %169 = vector.broadcast %21 : f32 to vector<8x128xf32>
    %170 = arith.addf %168, %169 : vector<8x128xf32>
    %cst_6 = arith.constant 0.000000e+00 : f32
    %171 = vector.broadcast %cst_6 : f32 to vector<8x128xf32>
    %172 = arith.maximumf %170, %171 : vector<8x128xf32>
    %173 = vector.broadcast %4 : f32 to vector<8x128xf32>
    %174 = arith.mulf %173, %152 : vector<8x128xf32>
    %175 = vector.broadcast %5 : f32 to vector<8x128xf32>
    %176 = arith.mulf %175, %154 : vector<8x128xf32>
    %177 = arith.addf %174, %176 : vector<8x128xf32>
    %178 = vector.broadcast %22 : f32 to vector<8x128xf32>
    %179 = arith.addf %177, %178 : vector<8x128xf32>
    %cst_7 = arith.constant 0.000000e+00 : f32
    %180 = vector.broadcast %cst_7 : f32 to vector<8x128xf32>
    %181 = arith.maximumf %179, %180 : vector<8x128xf32>
    %182 = vector.broadcast %6 : f32 to vector<8x128xf32>
    %183 = arith.mulf %182, %152 : vector<8x128xf32>
    %184 = vector.broadcast %7 : f32 to vector<8x128xf32>
    %185 = arith.mulf %184, %154 : vector<8x128xf32>
    %186 = arith.addf %183, %185 : vector<8x128xf32>
    %187 = vector.broadcast %23 : f32 to vector<8x128xf32>
    %188 = arith.addf %186, %187 : vector<8x128xf32>
    %cst_8 = arith.constant 0.000000e+00 : f32
    %189 = vector.broadcast %cst_8 : f32 to vector<8x128xf32>
    %190 = arith.maximumf %188, %189 : vector<8x128xf32>
    %191 = vector.broadcast %8 : f32 to vector<8x128xf32>
    %192 = arith.mulf %191, %152 : vector<8x128xf32>
    %193 = vector.broadcast %9 : f32 to vector<8x128xf32>
    %194 = arith.mulf %193, %154 : vector<8x128xf32>
    %195 = arith.addf %192, %194 : vector<8x128xf32>
    %196 = vector.broadcast %24 : f32 to vector<8x128xf32>
    %197 = arith.addf %195, %196 : vector<8x128xf32>
    %cst_9 = arith.constant 0.000000e+00 : f32
    %198 = vector.broadcast %cst_9 : f32 to vector<8x128xf32>
    %199 = arith.maximumf %197, %198 : vector<8x128xf32>
    %200 = vector.broadcast %10 : f32 to vector<8x128xf32>
    %201 = arith.mulf %200, %152 : vector<8x128xf32>
    %202 = vector.broadcast %11 : f32 to vector<8x128xf32>
    %203 = arith.mulf %202, %154 : vector<8x128xf32>
    %204 = arith.addf %201, %203 : vector<8x128xf32>
    %205 = vector.broadcast %25 : f32 to vector<8x128xf32>
    %206 = arith.addf %204, %205 : vector<8x128xf32>
    %cst_10 = arith.constant 0.000000e+00 : f32
    %207 = vector.broadcast %cst_10 : f32 to vector<8x128xf32>
    %208 = arith.maximumf %206, %207 : vector<8x128xf32>
    %209 = vector.broadcast %12 : f32 to vector<8x128xf32>
    %210 = arith.mulf %209, %152 : vector<8x128xf32>
    %211 = vector.broadcast %13 : f32 to vector<8x128xf32>
    %212 = arith.mulf %211, %154 : vector<8x128xf32>
    %213 = arith.addf %210, %212 : vector<8x128xf32>
    %214 = vector.broadcast %26 : f32 to vector<8x128xf32>
    %215 = arith.addf %213, %214 : vector<8x128xf32>
    %cst_11 = arith.constant 0.000000e+00 : f32
    %216 = vector.broadcast %cst_11 : f32 to vector<8x128xf32>
    %217 = arith.maximumf %215, %216 : vector<8x128xf32>
    %218 = vector.broadcast %14 : f32 to vector<8x128xf32>
    %219 = arith.mulf %218, %152 : vector<8x128xf32>
    %220 = vector.broadcast %15 : f32 to vector<8x128xf32>
    %221 = arith.mulf %220, %154 : vector<8x128xf32>
    %222 = arith.addf %219, %221 : vector<8x128xf32>
    %223 = vector.broadcast %27 : f32 to vector<8x128xf32>
    %224 = arith.addf %222, %223 : vector<8x128xf32>
    %cst_12 = arith.constant 0.000000e+00 : f32
    %225 = vector.broadcast %cst_12 : f32 to vector<8x128xf32>
    %226 = arith.maximumf %224, %225 : vector<8x128xf32>
    %227 = vector.broadcast %16 : f32 to vector<8x128xf32>
    %228 = arith.mulf %227, %152 : vector<8x128xf32>
    %229 = vector.broadcast %17 : f32 to vector<8x128xf32>
    %230 = arith.mulf %229, %154 : vector<8x128xf32>
    %231 = arith.addf %228, %230 : vector<8x128xf32>
    %232 = vector.broadcast %28 : f32 to vector<8x128xf32>
    %233 = arith.addf %231, %232 : vector<8x128xf32>
    %cst_13 = arith.constant 0.000000e+00 : f32
    %234 = vector.broadcast %cst_13 : f32 to vector<8x128xf32>
    %235 = arith.maximumf %233, %234 : vector<8x128xf32>
    %236 = vector.broadcast %18 : f32 to vector<8x128xf32>
    %237 = arith.mulf %236, %152 : vector<8x128xf32>
    %238 = vector.broadcast %19 : f32 to vector<8x128xf32>
    %239 = arith.mulf %238, %154 : vector<8x128xf32>
    %240 = arith.addf %237, %239 : vector<8x128xf32>
    %241 = vector.broadcast %29 : f32 to vector<8x128xf32>
    %242 = arith.addf %240, %241 : vector<8x128xf32>
    %cst_14 = arith.constant 0.000000e+00 : f32
    %243 = vector.broadcast %cst_14 : f32 to vector<8x128xf32>
    %244 = arith.maximumf %242, %243 : vector<8x128xf32>
    %245 = vector.broadcast %30 : f32 to vector<8x128xf32>
    %246 = arith.mulf %245, %163 : vector<8x128xf32>
    %247 = vector.broadcast %130 : f32 to vector<8x128xf32>
    %248 = arith.addf %246, %247 : vector<8x128xf32>
    %249 = vector.broadcast %31 : f32 to vector<8x128xf32>
    %250 = arith.mulf %249, %172 : vector<8x128xf32>
    %251 = arith.addf %248, %250 : vector<8x128xf32>
    %252 = vector.broadcast %32 : f32 to vector<8x128xf32>
    %253 = arith.mulf %252, %181 : vector<8x128xf32>
    %254 = arith.addf %251, %253 : vector<8x128xf32>
    %255 = vector.broadcast %33 : f32 to vector<8x128xf32>
    %256 = arith.mulf %255, %190 : vector<8x128xf32>
    %257 = arith.addf %254, %256 : vector<8x128xf32>
    %258 = vector.broadcast %34 : f32 to vector<8x128xf32>
    %259 = arith.mulf %258, %199 : vector<8x128xf32>
    %260 = arith.addf %257, %259 : vector<8x128xf32>
    %261 = vector.broadcast %35 : f32 to vector<8x128xf32>
    %262 = arith.mulf %261, %208 : vector<8x128xf32>
    %263 = arith.addf %260, %262 : vector<8x128xf32>
    %264 = vector.broadcast %36 : f32 to vector<8x128xf32>
    %265 = arith.mulf %264, %217 : vector<8x128xf32>
    %266 = arith.addf %263, %265 : vector<8x128xf32>
    %267 = vector.broadcast %37 : f32 to vector<8x128xf32>
    %268 = arith.mulf %267, %226 : vector<8x128xf32>
    %269 = arith.addf %266, %268 : vector<8x128xf32>
    %270 = vector.broadcast %38 : f32 to vector<8x128xf32>
    %271 = arith.mulf %270, %235 : vector<8x128xf32>
    %272 = arith.addf %269, %271 : vector<8x128xf32>
    %273 = vector.broadcast %39 : f32 to vector<8x128xf32>
    %274 = arith.mulf %273, %244 : vector<8x128xf32>
    %275 = arith.addf %272, %274 : vector<8x128xf32>
    %cst_15 = arith.constant 0.000000e+00 : f32
    %276 = vector.broadcast %cst_15 : f32 to vector<8x128xf32>
    %277 = arith.maximumf %275, %276 : vector<8x128xf32>
    %278 = vector.broadcast %40 : f32 to vector<8x128xf32>
    %279 = arith.mulf %278, %163 : vector<8x128xf32>
    %280 = vector.broadcast %131 : f32 to vector<8x128xf32>
    %281 = arith.addf %279, %280 : vector<8x128xf32>
    %282 = vector.broadcast %41 : f32 to vector<8x128xf32>
    %283 = arith.mulf %282, %172 : vector<8x128xf32>
    %284 = arith.addf %281, %283 : vector<8x128xf32>
    %285 = vector.broadcast %42 : f32 to vector<8x128xf32>
    %286 = arith.mulf %285, %181 : vector<8x128xf32>
    %287 = arith.addf %284, %286 : vector<8x128xf32>
    %288 = vector.broadcast %43 : f32 to vector<8x128xf32>
    %289 = arith.mulf %288, %190 : vector<8x128xf32>
    %290 = arith.addf %287, %289 : vector<8x128xf32>
    %291 = vector.broadcast %44 : f32 to vector<8x128xf32>
    %292 = arith.mulf %291, %199 : vector<8x128xf32>
    %293 = arith.addf %290, %292 : vector<8x128xf32>
    %294 = vector.broadcast %45 : f32 to vector<8x128xf32>
    %295 = arith.mulf %294, %208 : vector<8x128xf32>
    %296 = arith.addf %293, %295 : vector<8x128xf32>
    %297 = vector.broadcast %46 : f32 to vector<8x128xf32>
    %298 = arith.mulf %297, %217 : vector<8x128xf32>
    %299 = arith.addf %296, %298 : vector<8x128xf32>
    %300 = vector.broadcast %47 : f32 to vector<8x128xf32>
    %301 = arith.mulf %300, %226 : vector<8x128xf32>
    %302 = arith.addf %299, %301 : vector<8x128xf32>
    %303 = vector.broadcast %48 : f32 to vector<8x128xf32>
    %304 = arith.mulf %303, %235 : vector<8x128xf32>
    %305 = arith.addf %302, %304 : vector<8x128xf32>
    %306 = vector.broadcast %49 : f32 to vector<8x128xf32>
    %307 = arith.mulf %306, %244 : vector<8x128xf32>
    %308 = arith.addf %305, %307 : vector<8x128xf32>
    %cst_16 = arith.constant 0.000000e+00 : f32
    %309 = vector.broadcast %cst_16 : f32 to vector<8x128xf32>
    %310 = arith.maximumf %308, %309 : vector<8x128xf32>
    %311 = vector.broadcast %50 : f32 to vector<8x128xf32>
    %312 = arith.mulf %311, %163 : vector<8x128xf32>
    %313 = vector.broadcast %132 : f32 to vector<8x128xf32>
    %314 = arith.addf %312, %313 : vector<8x128xf32>
    %315 = vector.broadcast %51 : f32 to vector<8x128xf32>
    %316 = arith.mulf %315, %172 : vector<8x128xf32>
    %317 = arith.addf %314, %316 : vector<8x128xf32>
    %318 = vector.broadcast %52 : f32 to vector<8x128xf32>
    %319 = arith.mulf %318, %181 : vector<8x128xf32>
    %320 = arith.addf %317, %319 : vector<8x128xf32>
    %321 = vector.broadcast %53 : f32 to vector<8x128xf32>
    %322 = arith.mulf %321, %190 : vector<8x128xf32>
    %323 = arith.addf %320, %322 : vector<8x128xf32>
    %324 = vector.broadcast %54 : f32 to vector<8x128xf32>
    %325 = arith.mulf %324, %199 : vector<8x128xf32>
    %326 = arith.addf %323, %325 : vector<8x128xf32>
    %327 = vector.broadcast %55 : f32 to vector<8x128xf32>
    %328 = arith.mulf %327, %208 : vector<8x128xf32>
    %329 = arith.addf %326, %328 : vector<8x128xf32>
    %330 = vector.broadcast %56 : f32 to vector<8x128xf32>
    %331 = arith.mulf %330, %217 : vector<8x128xf32>
    %332 = arith.addf %329, %331 : vector<8x128xf32>
    %333 = vector.broadcast %57 : f32 to vector<8x128xf32>
    %334 = arith.mulf %333, %226 : vector<8x128xf32>
    %335 = arith.addf %332, %334 : vector<8x128xf32>
    %336 = vector.broadcast %58 : f32 to vector<8x128xf32>
    %337 = arith.mulf %336, %235 : vector<8x128xf32>
    %338 = arith.addf %335, %337 : vector<8x128xf32>
    %339 = vector.broadcast %59 : f32 to vector<8x128xf32>
    %340 = arith.mulf %339, %244 : vector<8x128xf32>
    %341 = arith.addf %338, %340 : vector<8x128xf32>
    %cst_17 = arith.constant 0.000000e+00 : f32
    %342 = vector.broadcast %cst_17 : f32 to vector<8x128xf32>
    %343 = arith.maximumf %341, %342 : vector<8x128xf32>
    %344 = vector.broadcast %60 : f32 to vector<8x128xf32>
    %345 = arith.mulf %344, %163 : vector<8x128xf32>
    %346 = vector.broadcast %133 : f32 to vector<8x128xf32>
    %347 = arith.addf %345, %346 : vector<8x128xf32>
    %348 = vector.broadcast %61 : f32 to vector<8x128xf32>
    %349 = arith.mulf %348, %172 : vector<8x128xf32>
    %350 = arith.addf %347, %349 : vector<8x128xf32>
    %351 = vector.broadcast %62 : f32 to vector<8x128xf32>
    %352 = arith.mulf %351, %181 : vector<8x128xf32>
    %353 = arith.addf %350, %352 : vector<8x128xf32>
    %354 = vector.broadcast %63 : f32 to vector<8x128xf32>
    %355 = arith.mulf %354, %190 : vector<8x128xf32>
    %356 = arith.addf %353, %355 : vector<8x128xf32>
    %357 = vector.broadcast %64 : f32 to vector<8x128xf32>
    %358 = arith.mulf %357, %199 : vector<8x128xf32>
    %359 = arith.addf %356, %358 : vector<8x128xf32>
    %360 = vector.broadcast %65 : f32 to vector<8x128xf32>
    %361 = arith.mulf %360, %208 : vector<8x128xf32>
    %362 = arith.addf %359, %361 : vector<8x128xf32>
    %363 = vector.broadcast %66 : f32 to vector<8x128xf32>
    %364 = arith.mulf %363, %217 : vector<8x128xf32>
    %365 = arith.addf %362, %364 : vector<8x128xf32>
    %366 = vector.broadcast %67 : f32 to vector<8x128xf32>
    %367 = arith.mulf %366, %226 : vector<8x128xf32>
    %368 = arith.addf %365, %367 : vector<8x128xf32>
    %369 = vector.broadcast %68 : f32 to vector<8x128xf32>
    %370 = arith.mulf %369, %235 : vector<8x128xf32>
    %371 = arith.addf %368, %370 : vector<8x128xf32>
    %372 = vector.broadcast %69 : f32 to vector<8x128xf32>
    %373 = arith.mulf %372, %244 : vector<8x128xf32>
    %374 = arith.addf %371, %373 : vector<8x128xf32>
    %cst_18 = arith.constant 0.000000e+00 : f32
    %375 = vector.broadcast %cst_18 : f32 to vector<8x128xf32>
    %376 = arith.maximumf %374, %375 : vector<8x128xf32>
    %377 = vector.broadcast %70 : f32 to vector<8x128xf32>
    %378 = arith.mulf %377, %163 : vector<8x128xf32>
    %379 = vector.broadcast %134 : f32 to vector<8x128xf32>
    %380 = arith.addf %378, %379 : vector<8x128xf32>
    %381 = vector.broadcast %71 : f32 to vector<8x128xf32>
    %382 = arith.mulf %381, %172 : vector<8x128xf32>
    %383 = arith.addf %380, %382 : vector<8x128xf32>
    %384 = vector.broadcast %72 : f32 to vector<8x128xf32>
    %385 = arith.mulf %384, %181 : vector<8x128xf32>
    %386 = arith.addf %383, %385 : vector<8x128xf32>
    %387 = vector.broadcast %73 : f32 to vector<8x128xf32>
    %388 = arith.mulf %387, %190 : vector<8x128xf32>
    %389 = arith.addf %386, %388 : vector<8x128xf32>
    %390 = vector.broadcast %74 : f32 to vector<8x128xf32>
    %391 = arith.mulf %390, %199 : vector<8x128xf32>
    %392 = arith.addf %389, %391 : vector<8x128xf32>
    %393 = vector.broadcast %75 : f32 to vector<8x128xf32>
    %394 = arith.mulf %393, %208 : vector<8x128xf32>
    %395 = arith.addf %392, %394 : vector<8x128xf32>
    %396 = vector.broadcast %76 : f32 to vector<8x128xf32>
    %397 = arith.mulf %396, %217 : vector<8x128xf32>
    %398 = arith.addf %395, %397 : vector<8x128xf32>
    %399 = vector.broadcast %77 : f32 to vector<8x128xf32>
    %400 = arith.mulf %399, %226 : vector<8x128xf32>
    %401 = arith.addf %398, %400 : vector<8x128xf32>
    %402 = vector.broadcast %78 : f32 to vector<8x128xf32>
    %403 = arith.mulf %402, %235 : vector<8x128xf32>
    %404 = arith.addf %401, %403 : vector<8x128xf32>
    %405 = vector.broadcast %79 : f32 to vector<8x128xf32>
    %406 = arith.mulf %405, %244 : vector<8x128xf32>
    %407 = arith.addf %404, %406 : vector<8x128xf32>
    %cst_19 = arith.constant 0.000000e+00 : f32
    %408 = vector.broadcast %cst_19 : f32 to vector<8x128xf32>
    %409 = arith.maximumf %407, %408 : vector<8x128xf32>
    %410 = vector.broadcast %80 : f32 to vector<8x128xf32>
    %411 = arith.mulf %410, %163 : vector<8x128xf32>
    %412 = vector.broadcast %135 : f32 to vector<8x128xf32>
    %413 = arith.addf %411, %412 : vector<8x128xf32>
    %414 = vector.broadcast %81 : f32 to vector<8x128xf32>
    %415 = arith.mulf %414, %172 : vector<8x128xf32>
    %416 = arith.addf %413, %415 : vector<8x128xf32>
    %417 = vector.broadcast %82 : f32 to vector<8x128xf32>
    %418 = arith.mulf %417, %181 : vector<8x128xf32>
    %419 = arith.addf %416, %418 : vector<8x128xf32>
    %420 = vector.broadcast %83 : f32 to vector<8x128xf32>
    %421 = arith.mulf %420, %190 : vector<8x128xf32>
    %422 = arith.addf %419, %421 : vector<8x128xf32>
    %423 = vector.broadcast %84 : f32 to vector<8x128xf32>
    %424 = arith.mulf %423, %199 : vector<8x128xf32>
    %425 = arith.addf %422, %424 : vector<8x128xf32>
    %426 = vector.broadcast %85 : f32 to vector<8x128xf32>
    %427 = arith.mulf %426, %208 : vector<8x128xf32>
    %428 = arith.addf %425, %427 : vector<8x128xf32>
    %429 = vector.broadcast %86 : f32 to vector<8x128xf32>
    %430 = arith.mulf %429, %217 : vector<8x128xf32>
    %431 = arith.addf %428, %430 : vector<8x128xf32>
    %432 = vector.broadcast %87 : f32 to vector<8x128xf32>
    %433 = arith.mulf %432, %226 : vector<8x128xf32>
    %434 = arith.addf %431, %433 : vector<8x128xf32>
    %435 = vector.broadcast %88 : f32 to vector<8x128xf32>
    %436 = arith.mulf %435, %235 : vector<8x128xf32>
    %437 = arith.addf %434, %436 : vector<8x128xf32>
    %438 = vector.broadcast %89 : f32 to vector<8x128xf32>
    %439 = arith.mulf %438, %244 : vector<8x128xf32>
    %440 = arith.addf %437, %439 : vector<8x128xf32>
    %cst_20 = arith.constant 0.000000e+00 : f32
    %441 = vector.broadcast %cst_20 : f32 to vector<8x128xf32>
    %442 = arith.maximumf %440, %441 : vector<8x128xf32>
    %443 = vector.broadcast %90 : f32 to vector<8x128xf32>
    %444 = arith.mulf %443, %163 : vector<8x128xf32>
    %445 = vector.broadcast %136 : f32 to vector<8x128xf32>
    %446 = arith.addf %444, %445 : vector<8x128xf32>
    %447 = vector.broadcast %91 : f32 to vector<8x128xf32>
    %448 = arith.mulf %447, %172 : vector<8x128xf32>
    %449 = arith.addf %446, %448 : vector<8x128xf32>
    %450 = vector.broadcast %92 : f32 to vector<8x128xf32>
    %451 = arith.mulf %450, %181 : vector<8x128xf32>
    %452 = arith.addf %449, %451 : vector<8x128xf32>
    %453 = vector.broadcast %93 : f32 to vector<8x128xf32>
    %454 = arith.mulf %453, %190 : vector<8x128xf32>
    %455 = arith.addf %452, %454 : vector<8x128xf32>
    %456 = vector.broadcast %94 : f32 to vector<8x128xf32>
    %457 = arith.mulf %456, %199 : vector<8x128xf32>
    %458 = arith.addf %455, %457 : vector<8x128xf32>
    %459 = vector.broadcast %95 : f32 to vector<8x128xf32>
    %460 = arith.mulf %459, %208 : vector<8x128xf32>
    %461 = arith.addf %458, %460 : vector<8x128xf32>
    %462 = vector.broadcast %96 : f32 to vector<8x128xf32>
    %463 = arith.mulf %462, %217 : vector<8x128xf32>
    %464 = arith.addf %461, %463 : vector<8x128xf32>
    %465 = vector.broadcast %97 : f32 to vector<8x128xf32>
    %466 = arith.mulf %465, %226 : vector<8x128xf32>
    %467 = arith.addf %464, %466 : vector<8x128xf32>
    %468 = vector.broadcast %98 : f32 to vector<8x128xf32>
    %469 = arith.mulf %468, %235 : vector<8x128xf32>
    %470 = arith.addf %467, %469 : vector<8x128xf32>
    %471 = vector.broadcast %99 : f32 to vector<8x128xf32>
    %472 = arith.mulf %471, %244 : vector<8x128xf32>
    %473 = arith.addf %470, %472 : vector<8x128xf32>
    %cst_21 = arith.constant 0.000000e+00 : f32
    %474 = vector.broadcast %cst_21 : f32 to vector<8x128xf32>
    %475 = arith.maximumf %473, %474 : vector<8x128xf32>
    %476 = vector.broadcast %100 : f32 to vector<8x128xf32>
    %477 = arith.mulf %476, %163 : vector<8x128xf32>
    %478 = vector.broadcast %137 : f32 to vector<8x128xf32>
    %479 = arith.addf %477, %478 : vector<8x128xf32>
    %480 = vector.broadcast %101 : f32 to vector<8x128xf32>
    %481 = arith.mulf %480, %172 : vector<8x128xf32>
    %482 = arith.addf %479, %481 : vector<8x128xf32>
    %483 = vector.broadcast %102 : f32 to vector<8x128xf32>
    %484 = arith.mulf %483, %181 : vector<8x128xf32>
    %485 = arith.addf %482, %484 : vector<8x128xf32>
    %486 = vector.broadcast %103 : f32 to vector<8x128xf32>
    %487 = arith.mulf %486, %190 : vector<8x128xf32>
    %488 = arith.addf %485, %487 : vector<8x128xf32>
    %489 = vector.broadcast %104 : f32 to vector<8x128xf32>
    %490 = arith.mulf %489, %199 : vector<8x128xf32>
    %491 = arith.addf %488, %490 : vector<8x128xf32>
    %492 = vector.broadcast %105 : f32 to vector<8x128xf32>
    %493 = arith.mulf %492, %208 : vector<8x128xf32>
    %494 = arith.addf %491, %493 : vector<8x128xf32>
    %495 = vector.broadcast %106 : f32 to vector<8x128xf32>
    %496 = arith.mulf %495, %217 : vector<8x128xf32>
    %497 = arith.addf %494, %496 : vector<8x128xf32>
    %498 = vector.broadcast %107 : f32 to vector<8x128xf32>
    %499 = arith.mulf %498, %226 : vector<8x128xf32>
    %500 = arith.addf %497, %499 : vector<8x128xf32>
    %501 = vector.broadcast %108 : f32 to vector<8x128xf32>
    %502 = arith.mulf %501, %235 : vector<8x128xf32>
    %503 = arith.addf %500, %502 : vector<8x128xf32>
    %504 = vector.broadcast %109 : f32 to vector<8x128xf32>
    %505 = arith.mulf %504, %244 : vector<8x128xf32>
    %506 = arith.addf %503, %505 : vector<8x128xf32>
    %cst_22 = arith.constant 0.000000e+00 : f32
    %507 = vector.broadcast %cst_22 : f32 to vector<8x128xf32>
    %508 = arith.maximumf %506, %507 : vector<8x128xf32>
    %509 = vector.broadcast %110 : f32 to vector<8x128xf32>
    %510 = arith.mulf %509, %163 : vector<8x128xf32>
    %511 = vector.broadcast %138 : f32 to vector<8x128xf32>
    %512 = arith.addf %510, %511 : vector<8x128xf32>
    %513 = vector.broadcast %111 : f32 to vector<8x128xf32>
    %514 = arith.mulf %513, %172 : vector<8x128xf32>
    %515 = arith.addf %512, %514 : vector<8x128xf32>
    %516 = vector.broadcast %112 : f32 to vector<8x128xf32>
    %517 = arith.mulf %516, %181 : vector<8x128xf32>
    %518 = arith.addf %515, %517 : vector<8x128xf32>
    %519 = vector.broadcast %113 : f32 to vector<8x128xf32>
    %520 = arith.mulf %519, %190 : vector<8x128xf32>
    %521 = arith.addf %518, %520 : vector<8x128xf32>
    %522 = vector.broadcast %114 : f32 to vector<8x128xf32>
    %523 = arith.mulf %522, %199 : vector<8x128xf32>
    %524 = arith.addf %521, %523 : vector<8x128xf32>
    %525 = vector.broadcast %115 : f32 to vector<8x128xf32>
    %526 = arith.mulf %525, %208 : vector<8x128xf32>
    %527 = arith.addf %524, %526 : vector<8x128xf32>
    %528 = vector.broadcast %116 : f32 to vector<8x128xf32>
    %529 = arith.mulf %528, %217 : vector<8x128xf32>
    %530 = arith.addf %527, %529 : vector<8x128xf32>
    %531 = vector.broadcast %117 : f32 to vector<8x128xf32>
    %532 = arith.mulf %531, %226 : vector<8x128xf32>
    %533 = arith.addf %530, %532 : vector<8x128xf32>
    %534 = vector.broadcast %118 : f32 to vector<8x128xf32>
    %535 = arith.mulf %534, %235 : vector<8x128xf32>
    %536 = arith.addf %533, %535 : vector<8x128xf32>
    %537 = vector.broadcast %119 : f32 to vector<8x128xf32>
    %538 = arith.mulf %537, %244 : vector<8x128xf32>
    %539 = arith.addf %536, %538 : vector<8x128xf32>
    %cst_23 = arith.constant 0.000000e+00 : f32
    %540 = vector.broadcast %cst_23 : f32 to vector<8x128xf32>
    %541 = arith.maximumf %539, %540 : vector<8x128xf32>
    %542 = vector.broadcast %120 : f32 to vector<8x128xf32>
    %543 = arith.mulf %542, %163 : vector<8x128xf32>
    %544 = vector.broadcast %139 : f32 to vector<8x128xf32>
    %545 = arith.addf %543, %544 : vector<8x128xf32>
    %546 = vector.broadcast %121 : f32 to vector<8x128xf32>
    %547 = arith.mulf %546, %172 : vector<8x128xf32>
    %548 = arith.addf %545, %547 : vector<8x128xf32>
    %549 = vector.broadcast %122 : f32 to vector<8x128xf32>
    %550 = arith.mulf %549, %181 : vector<8x128xf32>
    %551 = arith.addf %548, %550 : vector<8x128xf32>
    %552 = vector.broadcast %123 : f32 to vector<8x128xf32>
    %553 = arith.mulf %552, %190 : vector<8x128xf32>
    %554 = arith.addf %551, %553 : vector<8x128xf32>
    %555 = vector.broadcast %124 : f32 to vector<8x128xf32>
    %556 = arith.mulf %555, %199 : vector<8x128xf32>
    %557 = arith.addf %554, %556 : vector<8x128xf32>
    %558 = vector.broadcast %125 : f32 to vector<8x128xf32>
    %559 = arith.mulf %558, %208 : vector<8x128xf32>
    %560 = arith.addf %557, %559 : vector<8x128xf32>
    %561 = vector.broadcast %126 : f32 to vector<8x128xf32>
    %562 = arith.mulf %561, %217 : vector<8x128xf32>
    %563 = arith.addf %560, %562 : vector<8x128xf32>
    %564 = vector.broadcast %127 : f32 to vector<8x128xf32>
    %565 = arith.mulf %564, %226 : vector<8x128xf32>
    %566 = arith.addf %563, %565 : vector<8x128xf32>
    %567 = vector.broadcast %128 : f32 to vector<8x128xf32>
    %568 = arith.mulf %567, %235 : vector<8x128xf32>
    %569 = arith.addf %566, %568 : vector<8x128xf32>
    %570 = vector.broadcast %129 : f32 to vector<8x128xf32>
    %571 = arith.mulf %570, %244 : vector<8x128xf32>
    %572 = arith.addf %569, %571 : vector<8x128xf32>
    %cst_24 = arith.constant 0.000000e+00 : f32
    %573 = vector.broadcast %cst_24 : f32 to vector<8x128xf32>
    %574 = arith.maximumf %572, %573 : vector<8x128xf32>
    %575 = vector.broadcast %140 : f32 to vector<8x128xf32>
    %576 = arith.mulf %575, %277 : vector<8x128xf32>
    %577 = vector.broadcast %150 : f32 to vector<8x128xf32>
    %578 = arith.addf %576, %577 : vector<8x128xf32>
    %579 = vector.broadcast %141 : f32 to vector<8x128xf32>
    %580 = arith.mulf %579, %310 : vector<8x128xf32>
    %581 = arith.addf %578, %580 : vector<8x128xf32>
    %582 = vector.broadcast %142 : f32 to vector<8x128xf32>
    %583 = arith.mulf %582, %343 : vector<8x128xf32>
    %584 = arith.addf %581, %583 : vector<8x128xf32>
    %585 = vector.broadcast %143 : f32 to vector<8x128xf32>
    %586 = arith.mulf %585, %376 : vector<8x128xf32>
    %587 = arith.addf %584, %586 : vector<8x128xf32>
    %588 = vector.broadcast %144 : f32 to vector<8x128xf32>
    %589 = arith.mulf %588, %409 : vector<8x128xf32>
    %590 = arith.addf %587, %589 : vector<8x128xf32>
    %591 = vector.broadcast %145 : f32 to vector<8x128xf32>
    %592 = arith.mulf %591, %442 : vector<8x128xf32>
    %593 = arith.addf %590, %592 : vector<8x128xf32>
    %594 = vector.broadcast %146 : f32 to vector<8x128xf32>
    %595 = arith.mulf %594, %475 : vector<8x128xf32>
    %596 = arith.addf %593, %595 : vector<8x128xf32>
    %597 = vector.broadcast %147 : f32 to vector<8x128xf32>
    %598 = arith.mulf %597, %508 : vector<8x128xf32>
    %599 = arith.addf %596, %598 : vector<8x128xf32>
    %600 = vector.broadcast %148 : f32 to vector<8x128xf32>
    %601 = arith.mulf %600, %541 : vector<8x128xf32>
    %602 = arith.addf %599, %601 : vector<8x128xf32>
    %603 = vector.broadcast %149 : f32 to vector<8x128xf32>
    %604 = arith.mulf %603, %574 : vector<8x128xf32>
    %605 = arith.addf %602, %604 : vector<8x128xf32>
    %c0_25 = arith.constant 0 : index
    %c0_26 = arith.constant 0 : index
    %606 = vector.load %arg3[%c0_25, %c0_26] : memref<8x128xf32, #tpu.memory_space<vmem>>, vector<8x128xf32>
    tpu.vector_store %arg3[%c0_25, %c0_26], %605 {strides = array<i32>} : memref<8x128xf32, #tpu.memory_space<vmem>>, vector<8x128xf32>,
    return
  }
  func.func @transform_0(%arg0: i32) -> i32 {
    %c0_i32 = arith.constant 0 : i32
    %c0_i32_0 = arith.constant 0 : i32
    return %c0_i32 : i32
  }
  func.func @transform_1(%arg0: i32) -> (i32, i32, i32) {
    %c0_i32 = arith.constant 0 : i32
    %c0_i32_0 = arith.constant 0 : i32
    %c0_i32_1 = arith.constant 0 : i32
    return %c0_i32, %arg0, %c0_i32_0 : i32, i32, i32
  }
  func.func @transform_2(%arg0: i32) -> (i32, i32) {
    %c0_i32 = arith.constant 0 : i32
    %c0_i32_0 = arith.constant 0 : i32
    return %arg0, %c0_i32 : i32, i32
  }
}

</mosaic_0001>

<llo_original>
// kernel: tpu_custom_call.1
$region0: #{tpu_custom_call.1}
  #allocation0 [shape = 'u32[]', space=smem, size = 0x4, offset = 0x4, fixed_abs, tag = 'smem constant byte address 0x4 - core index']
  #allocation1 [shape = 'u32[144,128]{1,0:T(1,128)}', space=vmem, size = 0x12000, scoped, tag = 'internal scratch']
  %s0 = inlined_call_operand.hbm [shape: f32[151], index: 0, kind: input, shape index: {}]
  %s1 = inlined_call_operand.hbm [shape: f32[2,16,128], index: 1, kind: input, shape index: {}]
  %s2 = inlined_call_operand.hbm [shape: f32[16,128], index: 2, kind: output, shape index: {}]
  %s3 = sld [smem:[#allocation0]]
  $region49: #{tpu_custom_call.1} parent=0
    _
  %s5 = ssub.s32 1, %s3
  %s6 = scalar_select 0, %s5, %s3
  $region1: #{tpu_custom_call.1} parent=0
    #allocation2 [shape = 'u8[1024]{0}', space=smem, size = 0x400, scoped, tag = 'input window, operand 0, single buffered']
    #allocation3 [shape = 's32[2]{0}', space=sflag, size = 0x8, scoped, tag = 'scoped memory for tpu_custom_call.1']
    #allocation4 [shape = 's32[2]{0}', space=sflag, size = 0x8, scoped, tag = 'scoped memory for tpu_custom_call.1']
    #allocation5 [shape = 's32[2]{0}', space=sflag, size = 0x8, scoped, tag = 'scoped memory for tpu_custom_call.1']
    #allocation6 [shape = 'u8[16384]{0}', space=vmem, size = 0x4000, scoped, tag = 'input window, operand 1']
    #allocation7 [shape = 'u8[8192]{0}', space=vmem, size = 0x2000, scoped, tag = 'output window, operand 0']
    %7 = vsyncpa [#allocation5], 0
    %8 = vsyncpa [#allocation3], 0
    %s9 = scalar_lea.sflag [#allocation3], 1
    %10 = vsyncpa %s9, 0
    %11 = vsyncpa [#allocation4], 0
    %s12 = scalar_lea.sflag [#allocation4], 1
    %13 = vsyncpa %s12, 0
    loop: start=0, step=1, limit=4
    $region2: #{tpu_custom_call.1} parent=1 // loop_pre_header
      _
    $region3: #{tpu_custom_call.1} parent=1 // loop_header
      %s15 = sphi 0, %s19
      %p16 = scmp.ge.s32.totalorder %s15, 4
      %s23 = sphi 0, %s23
      %s25 = sphi 0, %s23
      %s26 = sphi 0, %s25
      %s40 = sphi 0, %s26
      %s46 = sphi 0, %s48
      %s49 = sphi 0, %s46
      %s50 = sphi 0, %s49
      %s66 = sphi 0, %s50
      %s72 = sphi 0, %s74
      %s75 = sphi 0, %s72
      %s76 = sphi 0, %s75
      %s92 = sphi 0, %s76
    $region4: #{tpu_custom_call.1} parent=1 // loop_header_branch
      %18 = sbr.rel (%p16) target = $region8
    $region5: #{tpu_custom_call.1} parent=1 // loop_body
      %s20 = ssub.s32 %s15, 1
      %s21 = ssub.s32 %s15, 2
      %s22 = sadd.s32 %s15, 1
      %s24 = sadd.s32 %s23, 1
      %p27 = scmp.eq.s32.totalorder %s15, 1
      %p28 = scmp.ne.s32.totalorder %s23, %s25
      %p29 = scmp.eq.s32.totalorder %s15, 0
      %p30 = por %p28, %p29
      %p31 = scmp.ne.s32.totalorder %s23, %s25
      %p32 = scmp.eq.s32.totalorder %s20, 1
      %p33 = por %p31, %p32
      %p34 = scmp.ne.s32.totalorder %s25, %s26
      %p35 = scmp.eq.s32.totalorder %s20, 0
      %p36 = por %p34, %p35
      %p37 = scmp.ne.s32.totalorder %s25, %s26
      %p38 = scmp.eq.s32.totalorder %s21, 1
      %p39 = por %p37, %p38
      %p41 = scmp.ne.s32.totalorder %s26, %s40
      %p42 = scmp.eq.s32.totalorder %s21, 0
      %p43 = por %p41, %p42
      %s44 = ssub.s32 %s15, %s22
      %p45 = scmp.eq.s32.totalorder %s44, 0
      %s47 = sadd.s32 %s46, 1
      %s48 = scalar_select %p45, %s46, %s47
      %p51 = pneg %p45
      %p52 = scmp.eq.s32.totalorder %s15, 1
      %p53 = por %p51, %p52
      %p54 = scmp.ne.s32.totalorder %s46, %s49
      %p55 = scmp.eq.s32.totalorder %s15, 0
      %p56 = por %p54, %p55
      %p57 = scmp.ne.s32.totalorder %s46, %s49
      %p58 = scmp.eq.s32.totalorder %s20, 1
      %p59 = por %p57, %p58
      %p60 = scmp.ne.s32.totalorder %s49, %s50
      %p61 = scmp.eq.s32.totalorder %s20, 0
      %p62 = por %p60, %p61
      %p63 = scmp.ne.s32.totalorder %s49, %s50
      %p64 = scmp.eq.s32.totalorder %s21, 1
      %p65 = por %p63, %p64
      %p67 = scmp.ne.s32.totalorder %s50, %s66
      %p68 = scmp.eq.s32.totalorder %s21, 0
      %p69 = por %p67, %p68
      %s70 = ssub.s32 %s15, %s22
      %p71 = scmp.eq.s32.totalorder %s70, 0
      %s73 = sadd.s32 %s72, 1
      %s74 = scalar_select %p71, %s72, %s73
      %p77 = pneg %p71
      %p78 = scmp.eq.s32.totalorder %s15, 1
      %p79 = por %p77, %p78
      %p80 = scmp.ne.s32.totalorder %s72, %s75
      %p81 = scmp.eq.s32.totalorder %s15, 0
      %p82 = por %p80, %p81
      %p83 = scmp.ne.s32.totalorder %s72, %s75
      %p84 = scmp.eq.s32.totalorder %s20, 1
      %p85 = por %p83, %p84
      %p86 = scmp.ne.s32.totalorder %s75, %s76
      %p87 = scmp.eq.s32.totalorder %s20, 0
      %p88 = por %p86, %p87
      %p89 = scmp.ne.s32.totalorder %s75, %s76
      %p90 = scmp.eq.s32.totalorder %s21, 1
      %p91 = por %p89, %p90
      %p93 = scmp.ne.s32.totalorder %s76, %s92
      %p94 = scmp.eq.s32.totalorder %s21, 0
      %p95 = por %p93, %p94
      %p96 = scmp.le.s32.totalorder 1, %s15
      %p97 = scmp.lt.s32.totalorder %s15, 3
      %p98 = pnand %p96, %p97
      %p99 = pneg %p98
      // Predicated region
      $region9: #{tpu_custom_call.1} parent=5 // pred_check
        _
      $region10: #{tpu_custom_call.1} parent=5 // pred_check_branch
        %101 = sbr.rel (%p98) target = $region12
      $region11: #{tpu_custom_call.1} parent=5 // pred_region
        %s102 = ssub.s32 %s15, 1
        // Predicated region
        $region13: #{tpu_custom_call.1} parent=11 // pred_check
          %p103 = pneg %p36
        $region14: #{tpu_custom_call.1} parent=11 // pred_check_branch
          %105 = sbr.rel (%p103) target = $region16
        $region15: #{tpu_custom_call.1} parent=11 // pred_region
          %s107 = ssub.s32 32, 32
          %108 = vsyncadd [#allocation5], %s107
          %111 = dma.hbm_to_smem %s0, 32, [#allocation2], [#allocation5]
        $region16: #{tpu_custom_call.1} parent=11 // pred_fallthru
          _
      $region12: #{tpu_custom_call.1} parent=5 // pred_fallthru
        _
      %p112 = scmp.lt.s32.totalorder %s15, 2
      // Predicated region
      $region17: #{tpu_custom_call.1} parent=5 // pred_check
        %p113 = pneg %p112
      $region18: #{tpu_custom_call.1} parent=5 // pred_check_branch
        %115 = sbr.rel (%p113) target = $region20
      $region19: #{tpu_custom_call.1} parent=5 // pred_region
        // Predicated region
        $region21: #{tpu_custom_call.1} parent=19 // pred_check
          %p116 = pneg %p56
        $region22: #{tpu_custom_call.1} parent=19 // pred_check_branch
          %118 = sbr.rel (%p116) target = $region24
        $region23: #{tpu_custom_call.1} parent=19 // pred_region
          %s119 = sand.u32 %s46, 1
          %s120 = scalar_lea.sflag [#allocation3], %s119
          %s121 = sand.u32 %s46, 1
          %s122 = smul.addr %s121, 16
          %s123 = scalar_lea.vmem [#allocation6], %s122
          %s125 = ssub.s32 256, 256
          %126 = vsyncadd %s120, %s125
          %s127 = smul.addr %s15, 128
          %s128 = scalar_lea.hbm %s1, %s127
          %s129 = sshll.u32 %s123, 4
          %s130 = int_to_ptr.vmem [resolvable:$true] %s129
          %135 = dma.hbm_to_vmem [thread:$0]  %s128, 256, %s130, %s120, 256, 128, 8
        $region24: #{tpu_custom_call.1} parent=19 // pred_fallthru
          _
      $region20: #{tpu_custom_call.1} parent=5 // pred_fallthru
        _
      %p136 = scmp.le.s32.totalorder 1, %s15
      %p137 = scmp.lt.s32.totalorder %s15, 3
      %p138 = pnand %p136, %p137
      %p139 = pneg %p138
      // Predicated region
      $region25: #{tpu_custom_call.1} parent=5 // pred_check
        _
      $region26: #{tpu_custom_call.1} parent=5 // pred_check_branch
        %141 = sbr.rel (%p138) target = $region28
      $region27: #{tpu_custom_call.1} parent=5 // pred_region
        %s142 = ssub.s32 %s15, 1
        // Predicated region
        $region29: #{tpu_custom_call.1} parent=27 // pred_check
          %p143 = pneg %p36
        $region30: #{tpu_custom_call.1} parent=27 // pred_check_branch
          %145 = sbr.rel (%p143) target = $region32
        $region31: #{tpu_custom_call.1} parent=27 // pred_region
          %146 = dma.done [#allocation5], 32
        $region32: #{tpu_custom_call.1} parent=27 // pred_fallthru
          _
        %s147 = sand.u32 %s49, 1
        %s148 = scalar_lea.sflag [#allocation3], %s147
        %s149 = sand.u32 %s49, 1
        %s150 = smul.addr %s149, 16
        %s151 = scalar_lea.vmem [#allocation6], %s150
        // Predicated region
        $region33: #{tpu_custom_call.1} parent=27 // pred_check
          %p152 = pneg %p62
        $region34: #{tpu_custom_call.1} parent=27 // pred_check_branch
          %154 = sbr.rel (%p152) target = $region36
        $region35: #{tpu_custom_call.1} parent=27 // pred_region
          %155 = dma.done %s148, 256
        $region36: #{tpu_custom_call.1} parent=27 // pred_fallthru
          _
        %156 = sfence
        %p157 = pneg %p36
        %p158 = pneg %p33
        %s159 = sand.u32 %s49, 1
        %s160 = scalar_lea.sflag [#allocation3], %s159
        %s161 = sand.u32 %s49, 1
        %s162 = smul.addr %s161, 16
        %s163 = scalar_lea.vmem [#allocation6], %s162
        %p164 = pneg %p62
        %p165 = pneg %p59
        %p166 = pneg %p88
        %p167 = pneg %p85
        %s168 = sand.u32 %s75, 1
        %s169 = scalar_lea.sflag [#allocation4], %s168
        %s170 = sand.u32 %s75, 1
        %s171 = smul.addr %s170, 8
        %s172 = scalar_lea.vmem [#allocation7], %s171
        %s173 = sld [smem:[#allocation2]]
        %s174 = sld [smem:[#allocation2 + $0x1]]
        %s175 = sld [smem:[#allocation2 + $0x2]]
        %s176 = sld [smem:[#allocation2 + $0x3]]
        %s177 = sld [smem:[#allocation2 + $0x4]]
        %s178 = sld [smem:[#allocation2 + $0x5]]
        %s179 = sld [smem:[#allocation2 + $0x6]]
        %s180 = sld [smem:[#allocation2 + $0x7]]
        %s181 = sld [smem:[#allocation2 + $0x8]]
        %s182 = sld [smem:[#allocation2 + $0x9]]
        %s183 = sld [smem:[#allocation2 + $0xa]]
        %s184 = sld [smem:[#allocation2 + $0xb]]
        %s185 = sld [smem:[#allocation2 + $0xc]]
        %s186 = sld [smem:[#allocation2 + $0xd]]
        %s187 = sld [smem:[#allocation2 + $0xe]]
        %s188 = sld [smem:[#allocation2 + $0xf]]
        %s189 = sld [smem:[#allocation2 + $0x10]]
        %s190 = sld [smem:[#allocation2 + $0x11]]
        %s191 = sld [smem:[#allocation2 + $0x12]]
        %s192 = sld [smem:[#allocation2 + $0x13]]
        %s193 = sld [smem:[#allocation2 + $0x14]]
        %s194 = sld [smem:[#allocation2 + $0x15]]
        %s195 = sld [smem:[#allocation2 + $0x16]]
        %s196 = sld [smem:[#allocation2 + $0x17]]
        %s197 = sld [smem:[#allocation2 + $0x18]]
        %s198 = sld [smem:[#allocation2 + $0x19]]
        %s199 = sld [smem:[#allocation2 + $0x1a]]
        %s200 = sld [smem:[#allocation2 + $0x1b]]
        %s201 = sld [smem:[#allocation2 + $0x1c]]
        %s202 = sld [smem:[#allocation2 + $0x1d]]
        %s203 = sld [smem:[#allocation2 + $0x1e]]
        %s204 = sld [smem:[#allocation2 + $0x1f]]
        %s205 = sld [smem:[#allocation2 + $0x20]]
        %s206 = sld [smem:[#allocation2 + $0x21]]
        %s207 = sld [smem:[#allocation2 + $0x22]]
        %s208 = sld [smem:[#allocation2 + $0x23]]
        %s209 = sld [smem:[#allocation2 + $0x24]]
        %s210 = sld [smem:[#allocation2 + $0x25]]
        %s211 = sld [smem:[#allocation2 + $0x26]]
        %s212 = sld [smem:[#allocation2 + $0x27]]
        %s213 = sld [smem:[#allocation2 + $0x28]]
        %s214 = sld [smem:[#allocation2 + $0x29]]
        %s215 = sld [smem:[#allocation2 + $0x2a]]
        %s216 = sld [smem:[#allocation2 + $0x2b]]
        %s217 = sld [smem:[#allocation2 + $0x2c]]
        %s218 = sld [smem:[#allocation2 + $0x2d]]
        %s219 = sld [smem:[#allocation2 + $0x2e]]
        %s220 = sld [smem:[#allocation2 + $0x2f]]
        %s221 = sld [smem:[#allocation2 + $0x30]]
        %s222 = sld [smem:[#allocation2 + $0x31]]
        %s223 = sld [smem:[#allocation2 + $0x32]]
        %s224 = sld [smem:[#allocation2 + $0x33]]
        %s225 = sld [smem:[#allocation2 + $0x34]]
        %s226 = sld [smem:[#allocation2 + $0x35]]
        %s227 = sld [smem:[#allocation2 + $0x36]]
        %s228 = sld [smem:[#allocation2 + $0x37]]
        %s229 = sld [smem:[#allocation2 + $0x38]]
        %s230 = sld [smem:[#allocation2 + $0x39]]
        %s231 = sld [smem:[#allocation2 + $0x3a]]
        %s232 = sld [smem:[#allocation2 + $0x3b]]
        %s233 = sld [smem:[#allocation2 + $0x3c]]
        %s234 = sld [smem:[#allocation2 + $0x3d]]
        %s235 = sld [smem:[#allocation2 + $0x3e]]
        %s236 = sld [smem:[#allocation2 + $0x3f]]
        %s237 = sld [smem:[#allocation2 + $0x40]]
        %s238 = sld [smem:[#allocation2 + $0x41]]
        %s239 = sld [smem:[#allocation2 + $0x42]]
        %s240 = sld [smem:[#allocation2 + $0x43]]
        %s241 = sld [smem:[#allocation2 + $0x44]]
        %s242 = sld [smem:[#allocation2 + $0x45]]
        %s243 = sld [smem:[#allocation2 + $0x46]]
        %s244 = sld [smem:[#allocation2 + $0x47]]
        %s245 = sld [smem:[#allocation2 + $0x48]]
        %s246 = sld [smem:[#allocation2 + $0x49]]
        %s247 = sld [smem:[#allocation2 + $0x4a]]
        %s248 = sld [smem:[#allocation2 + $0x4b]]
        %s249 = sld [smem:[#allocation2 + $0x4c]]
        %s250 = sld [smem:[#allocation2 + $0x4d]]
        %s251 = sld [smem:[#allocation2 + $0x4e]]
        %s252 = sld [smem:[#allocation2 + $0x4f]]
        %s253 = sld [smem:[#allocation2 + $0x50]]
        %s254 = sld [smem:[#allocation2 + $0x51]]
        %s255 = sld [smem:[#allocation2 + $0x52]]
        %s256 = sld [smem:[#allocation2 + $0x53]]
        %s257 = sld [smem:[#allocation2 + $0x54]]
        %s258 = sld [smem:[#allocation2 + $0x55]]
        %s259 = sld [smem:[#allocation2 + $0x56]]
        %s260 = sld [smem:[#allocation2 + $0x57]]
        %s261 = sld [smem:[#allocation2 + $0x58]]
        %s262 = sld [smem:[#allocation2 + $0x59]]
        %s263 = sld [smem:[#allocation2 + $0x5a]]
        %s264 = sld [smem:[#allocation2 + $0x5b]]
        %s265 = sld [smem:[#allocation2 + $0x5c]]
        %s266 = sld [smem:[#allocation2 + $0x5d]]
        %s267 = sld [smem:[#allocation2 + $0x5e]]
        %s268 = sld [smem:[#allocation2 + $0x5f]]
        %s269 = sld [smem:[#allocation2 + $0x60]]
        %s270 = sld [smem:[#allocation2 + $0x61]]
        %s271 = sld [smem:[#allocation2 + $0x62]]
        %s272 = sld [smem:[#allocation2 + $0x63]]
        %s273 = sld [smem:[#allocation2 + $0x64]]
        %s274 = sld [smem:[#allocation2 + $0x65]]
        %s275 = sld [smem:[#allocation2 + $0x66]]
        %s276 = sld [smem:[#allocation2 + $0x67]]
        %s277 = sld [smem:[#allocation2 + $0x68]]
        %s278 = sld [smem:[#allocation2 + $0x69]]
        %s279 = sld [smem:[#allocation2 + $0x6a]]
        %s280 = sld [smem:[#allocation2 + $0x6b]]
        %s281 = sld [smem:[#allocation2 + $0x6c]]
        %s282 = sld [smem:[#allocation2 + $0x6d]]
        %s283 = sld [smem:[#allocation2 + $0x6e]]
        %s284 = sld [smem:[#allocation2 + $0x6f]]
        %s285 = sld [smem:[#allocation2 + $0x70]]
        %s286 = sld [smem:[#allocation2 + $0x71]]
        %s287 = sld [smem:[#allocation2 + $0x72]]
        %s288 = sld [smem:[#allocation2 + $0x73]]
        %s289 = sld [smem:[#allocation2 + $0x74]]
        %s290 = sld [smem:[#allocation2 + $0x75]]
        %s291 = sld [smem:[#allocation2 + $0x76]]
        %s292 = sld [smem:[#allocation2 + $0x77]]
        %s293 = sld [smem:[#allocation2 + $0x78]]
        %s294 = sld [smem:[#allocation2 + $0x79]]
        %s295 = sld [smem:[#allocation2 + $0x7a]]
        %s296 = sld [smem:[#allocation2 + $0x7b]]
        %s297 = sld [smem:[#allocation2 + $0x7c]]
        %s298 = sld [smem:[#allocation2 + $0x7d]]
        %s299 = sld [smem:[#allocation2 + $0x7e]]
        %s300 = sld [smem:[#allocation2 + $0x7f]]
        %s301 = sld [smem:[#allocation2 + $0x80]]
        %s302 = sld [smem:[#allocation2 + $0x81]]
        %s303 = sld [smem:[#allocation2 + $0x82]]
        %s304 = sld [smem:[#allocation2 + $0x83]]
        %s305 = sld [smem:[#allocation2 + $0x84]]
        %s306 = sld [smem:[#allocation2 + $0x85]]
        %s307 = sld [smem:[#allocation2 + $0x86]]
        %s308 = sld [smem:[#allocation2 + $0x87]]
        %s309 = sld [smem:[#allocation2 + $0x88]]
        %s310 = sld [smem:[#allocation2 + $0x89]]
        %s311 = sld [smem:[#allocation2 + $0x8a]]
        %s312 = sld [smem:[#allocation2 + $0x8b]]
        %s313 = sld [smem:[#allocation2 + $0x8c]]
        %s314 = sld [smem:[#allocation2 + $0x8d]]
        %s315 = sld [smem:[#allocation2 + $0x8e]]
        %s316 = sld [smem:[#allocation2 + $0x8f]]
        %s317 = sld [smem:[#allocation2 + $0x90]]
        %s318 = sld [smem:[#allocation2 + $0x91]]
        %s319 = sld [smem:[#allocation2 + $0x92]]
        %s320 = sld [smem:[#allocation2 + $0x93]]
        %s321 = sld [smem:[#allocation2 + $0x94]]
        %s322 = sld [smem:[#allocation2 + $0x95]]
        %s323 = sld [smem:[#allocation2 + $0x96]]
        %v324 = vld [vmem:[%s151] sm:$0xff]
        %s325 = scalar_lea.vmem %s151, 8 [#allocation6]
        %v326 = vld [vmem:[%s325] sm:$0xff]
        %v327 = vstv %s173
        %v328 = vmul.f32 %v327, %v324
        %v329 = vstv %s174
        %v330 = vmul.f32 %v329, %v326
        %v331 = vadd.f32 %v328, %v330
        %v332 = vstv %s193
        %v333 = vadd.f32 %v331, %v332
        %v334 = vmax.f32 %v333, 0.0
        %v335 = vstv %s175
        %v336 = vmul.f32 %v335, %v324
        %v337 = vstv %s176
        %v338 = vmul.f32 %v337, %v326
        %v339 = vadd.f32 %v336, %v338
        %v340 = vstv %s194
        %v341 = vadd.f32 %v339, %v340
        %v342 = vmax.f32 %v341, 0.0
        %v343 = vstv %s177
        %v344 = vmul.f32 %v343, %v324
        %v345 = vstv %s178
        %v346 = vmul.f32 %v345, %v326
        %v347 = vadd.f32 %v344, %v346
        %v348 = vstv %s195
        %v349 = vadd.f32 %v347, %v348
        %v350 = vmax.f32 %v349, 0.0
        %v351 = vstv %s179
        %v352 = vmul.f32 %v351, %v324
        %v353 = vstv %s180
        %v354 = vmul.f32 %v353, %v326
        %v355 = vadd.f32 %v352, %v354
        %v356 = vstv %s196
        %v357 = vadd.f32 %v355, %v356
        %v358 = vmax.f32 %v357, 0.0
        %v359 = vstv %s181
        %v360 = vmul.f32 %v359, %v324
        %v361 = vstv %s182
        %v362 = vmul.f32 %v361, %v326
        %v363 = vadd.f32 %v360, %v362
        %v364 = vstv %s197
        %v365 = vadd.f32 %v363, %v364
        %v366 = vmax.f32 %v365, 0.0
        %v367 = vstv %s183
        %v368 = vmul.f32 %v367, %v324
        %v369 = vstv %s184
        %v370 = vmul.f32 %v369, %v326
        %v371 = vadd.f32 %v368, %v370
        %v372 = vstv %s198
        %v373 = vadd.f32 %v371, %v372
        %v374 = vmax.f32 %v373, 0.0
        %v375 = vstv %s185
        %v376 = vmul.f32 %v375, %v324
        %v377 = vstv %s186
        %v378 = vmul.f32 %v377, %v326
        %v379 = vadd.f32 %v376, %v378
        %v380 = vstv %s199
        %v381 = vadd.f32 %v379, %v380
        %v382 = vmax.f32 %v381, 0.0
        %v383 = vstv %s187
        %v384 = vmul.f32 %v383, %v324
        %v385 = vstv %s188
        %v386 = vmul.f32 %v385, %v326
        %v387 = vadd.f32 %v384, %v386
        %v388 = vstv %s200
        %v389 = vadd.f32 %v387, %v388
        %v390 = vmax.f32 %v389, 0.0
        %v391 = vstv %s189
        %v392 = vmul.f32 %v391, %v324
        %v393 = vstv %s190
        %v394 = vmul.f32 %v393, %v326
        %v395 = vadd.f32 %v392, %v394
        %v396 = vstv %s201
        %v397 = vadd.f32 %v395, %v396
        %v398 = vmax.f32 %v397, 0.0
        %v399 = vstv %s191
        %v400 = vmul.f32 %v399, %v324
        %v401 = vstv %s192
        %v402 = vmul.f32 %v401, %v326
        %v403 = vadd.f32 %v400, %v402
        %v404 = vstv %s202
        %v405 = vadd.f32 %v403, %v404
        %v406 = vmax.f32 %v405, 0.0
        %v407 = vstv %s203
        %v408 = vmul.f32 %v407, %v334
        %v409 = vstv %s303
        %v410 = vadd.f32 %v408, %v409
        %v411 = vstv %s204
        %v412 = vmul.f32 %v411, %v342
        %v413 = vadd.f32 %v410, %v412
        %v414 = vstv %s205
        %v415 = vmul.f32 %v414, %v350
        %v416 = vadd.f32 %v413, %v415
        %v417 = vstv %s206
        %v418 = vmul.f32 %v417, %v358
        %v419 = vadd.f32 %v416, %v418
        %v420 = vstv %s207
        %v421 = vmul.f32 %v420, %v366
        %v422 = vadd.f32 %v419, %v421
        %v423 = vstv %s208
        %v424 = vmul.f32 %v423, %v374
        %v425 = vadd.f32 %v422, %v424
        %v426 = vstv %s209
        %v427 = vmul.f32 %v426, %v382
        %v428 = vadd.f32 %v425, %v427
        %v429 = vstv %s210
        %v430 = vmul.f32 %v429, %v390
        %v431 = vadd.f32 %v428, %v430
        %v432 = vstv %s211
        %v433 = vmul.f32 %v432, %v398
        %v434 = vadd.f32 %v431, %v433
        %v435 = vstv %s212
        %v436 = vmul.f32 %v435, %v406
        %v437 = vadd.f32 %v434, %v436
        %v438 = vmax.f32 %v437, 0.0
        %v439 = vstv %s213
        %v440 = vmul.f32 %v439, %v334
        %v441 = vstv %s304
        %v442 = vadd.f32 %v440, %v441
        %v443 = vstv %s214
        %v444 = vmul.f32 %v443, %v342
        %v445 = vadd.f32 %v442, %v444
        %v446 = vstv %s215
        %v447 = vmul.f32 %v446, %v350
        %v448 = vadd.f32 %v445, %v447
        %v449 = vstv %s216
        %v450 = vmul.f32 %v449, %v358
        %v451 = vadd.f32 %v448, %v450
        %v452 = vstv %s217
        %v453 = vmul.f32 %v452, %v366
        %v454 = vadd.f32 %v451, %v453
        %v455 = vstv %s218
        %v456 = vmul.f32 %v455, %v374
        %v457 = vadd.f32 %v454, %v456
        %v458 = vstv %s219
        %v459 = vmul.f32 %v458, %v382
        %v460 = vadd.f32 %v457, %v459
        %v461 = vstv %s220
        %v462 = vmul.f32 %v461, %v390
        %v463 = vadd.f32 %v460, %v462
        %v464 = vstv %s221
        %v465 = vmul.f32 %v464, %v398
        %v466 = vadd.f32 %v463, %v465
        %v467 = vstv %s222
        %v468 = vmul.f32 %v467, %v406
        %v469 = vadd.f32 %v466, %v468
        %v470 = vmax.f32 %v469, 0.0
        %v471 = vstv %s223
        %v472 = vmul.f32 %v471, %v334
        %v473 = vstv %s305
        %v474 = vadd.f32 %v472, %v473
        %v475 = vstv %s224
        %v476 = vmul.f32 %v475, %v342
        %v477 = vadd.f32 %v474, %v476
        %v478 = vstv %s225
        %v479 = vmul.f32 %v478, %v350
        %v480 = vadd.f32 %v477, %v479
        %v481 = vstv %s226
        %v482 = vmul.f32 %v481, %v358
        %v483 = vadd.f32 %v480, %v482
        %v484 = vstv %s227
        %v485 = vmul.f32 %v484, %v366
        %v486 = vadd.f32 %v483, %v485
        %v487 = vstv %s228
        %v488 = vmul.f32 %v487, %v374
        %v489 = vadd.f32 %v486, %v488
        %v490 = vstv %s229
        %v491 = vmul.f32 %v490, %v382
        %v492 = vadd.f32 %v489, %v491
        %v493 = vstv %s230
        %v494 = vmul.f32 %v493, %v390
        %v495 = vadd.f32 %v492, %v494
        %v496 = vstv %s231
        %v497 = vmul.f32 %v496, %v398
        %v498 = vadd.f32 %v495, %v497
        %v499 = vstv %s232
        %v500 = vmul.f32 %v499, %v406
        %v501 = vadd.f32 %v498, %v500
        %v502 = vmax.f32 %v501, 0.0
        %v503 = vstv %s233
        %v504 = vmul.f32 %v503, %v334
        %v505 = vstv %s306
        %v506 = vadd.f32 %v504, %v505
        %v507 = vstv %s234
        %v508 = vmul.f32 %v507, %v342
        %v509 = vadd.f32 %v506, %v508
        %v510 = vstv %s235
        %v511 = vmul.f32 %v510, %v350
        %v512 = vadd.f32 %v509, %v511
        %v513 = vstv %s236
        %v514 = vmul.f32 %v513, %v358
        %v515 = vadd.f32 %v512, %v514
        %v516 = vstv %s237
        %v517 = vmul.f32 %v516, %v366
        %v518 = vadd.f32 %v515, %v517
        %v519 = vstv %s238
        %v520 = vmul.f32 %v519, %v374
        %v521 = vadd.f32 %v518, %v520
        %v522 = vstv %s239
        %v523 = vmul.f32 %v522, %v382
        %v524 = vadd.f32 %v521, %v523
        %v525 = vstv %s240
        %v526 = vmul.f32 %v525, %v390
        %v527 = vadd.f32 %v524, %v526
        %v528 = vstv %s241
        %v529 = vmul.f32 %v528, %v398
        %v530 = vadd.f32 %v527, %v529
        %v531 = vstv %s242
        %v532 = vmul.f32 %v531, %v406
        %v533 = vadd.f32 %v530, %v532
        %v534 = vmax.f32 %v533, 0.0
        %v535 = vstv %s243
        %v536 = vmul.f32 %v535, %v334
        %v537 = vstv %s307
        %v538 = vadd.f32 %v536, %v537
        %v539 = vstv %s244
        %v540 = vmul.f32 %v539, %v342
        %v541 = vadd.f32 %v538, %v540
        %v542 = vstv %s245
        %v543 = vmul.f32 %v542, %v350
        %v544 = vadd.f32 %v541, %v543
        %v545 = vstv %s246
        %v546 = vmul.f32 %v545, %v358
        %v547 = vadd.f32 %v544, %v546
        %v548 = vstv %s247
        %v549 = vmul.f32 %v548, %v366
        %v550 = vadd.f32 %v547, %v549
        %v551 = vstv %s248
        %v552 = vmul.f32 %v551, %v374
        %v553 = vadd.f32 %v550, %v552
        %v554 = vstv %s249
        %v555 = vmul.f32 %v554, %v382
        %v556 = vadd.f32 %v553, %v555
        %v557 = vstv %s250
        %v558 = vmul.f32 %v557, %v390
        %v559 = vadd.f32 %v556, %v558
        %v560 = vstv %s251
        %v561 = vmul.f32 %v560, %v398
        %v562 = vadd.f32 %v559, %v561
        %v563 = vstv %s252
        %v564 = vmul.f32 %v563, %v406
        %v565 = vadd.f32 %v562, %v564
        %v566 = vmax.f32 %v565, 0.0
        %v567 = vstv %s253
        %v568 = vmul.f32 %v567, %v334
        %v569 = vstv %s308
        %v570 = vadd.f32 %v568, %v569
        %v571 = vstv %s254
        %v572 = vmul.f32 %v571, %v342
        %v573 = vadd.f32 %v570, %v572
        %v574 = vstv %s255
        %v575 = vmul.f32 %v574, %v350
        %v576 = vadd.f32 %v573, %v575
        %v577 = vstv %s256
        %v578 = vmul.f32 %v577, %v358
        %v579 = vadd.f32 %v576, %v578
        %v580 = vstv %s257
        %v581 = vmul.f32 %v580, %v366
        %v582 = vadd.f32 %v579, %v581
        %v583 = vstv %s258
        %v584 = vmul.f32 %v583, %v374
        %v585 = vadd.f32 %v582, %v584
        %v586 = vstv %s259
        %v587 = vmul.f32 %v586, %v382
        %v588 = vadd.f32 %v585, %v587
        %v589 = vstv %s260
        %v590 = vmul.f32 %v589, %v390
        %v591 = vadd.f32 %v588, %v590
        %v592 = vstv %s261
        %v593 = vmul.f32 %v592, %v398
        %v594 = vadd.f32 %v591, %v593
        %v595 = vstv %s262
        %v596 = vmul.f32 %v595, %v406
        %v597 = vadd.f32 %v594, %v596
        %v598 = vmax.f32 %v597, 0.0
        %v599 = vstv %s263
        %v600 = vmul.f32 %v599, %v334
        %v601 = vstv %s309
        %v602 = vadd.f32 %v600, %v601
        %v603 = vstv %s264
        %v604 = vmul.f32 %v603, %v342
        %v605 = vadd.f32 %v602, %v604
        %v606 = vstv %s265
        %v607 = vmul.f32 %v606, %v350
        %v608 = vadd.f32 %v605, %v607
        %v609 = vstv %s266
        %v610 = vmul.f32 %v609, %v358
        %v611 = vadd.f32 %v608, %v610
        %v612 = vstv %s267
        %v613 = vmul.f32 %v612, %v366
        %v614 = vadd.f32 %v611, %v613
        %v615 = vstv %s268
        %v616 = vmul.f32 %v615, %v374
        %v617 = vadd.f32 %v614, %v616
        %v618 = vstv %s269
        %v619 = vmul.f32 %v618, %v382
        %v620 = vadd.f32 %v617, %v619
        %v621 = vstv %s270
        %v622 = vmul.f32 %v621, %v390
        %v623 = vadd.f32 %v620, %v622
        %v624 = vstv %s271
        %v625 = vmul.f32 %v624, %v398
        %v626 = vadd.f32 %v623, %v625
        %v627 = vstv %s272
        %v628 = vmul.f32 %v627, %v406
        %v629 = vadd.f32 %v626, %v628
        %v630 = vmax.f32 %v629, 0.0
        %v631 = vstv %s273
        %v632 = vmul.f32 %v631, %v334
        %v633 = vstv %s310
        %v634 = vadd.f32 %v632, %v633
        %v635 = vstv %s274
        %v636 = vmul.f32 %v635, %v342
        %v637 = vadd.f32 %v634, %v636
        %v638 = vstv %s275
        %v639 = vmul.f32 %v638, %v350
        %v640 = vadd.f32 %v637, %v639
        %v641 = vstv %s276
        %v642 = vmul.f32 %v641, %v358
        %v643 = vadd.f32 %v640, %v642
        %v644 = vstv %s277
        %v645 = vmul.f32 %v644, %v366
        %v646 = vadd.f32 %v643, %v645
        %v647 = vstv %s278
        %v648 = vmul.f32 %v647, %v374
        %v649 = vadd.f32 %v646, %v648
        %v650 = vstv %s279
        %v651 = vmul.f32 %v650, %v382
        %v652 = vadd.f32 %v649, %v651
        %v653 = vstv %s280
        %v654 = vmul.f32 %v653, %v390
        %v655 = vadd.f32 %v652, %v654
        %v656 = vstv %s281
        %v657 = vmul.f32 %v656, %v398
        %v658 = vadd.f32 %v655, %v657
        %v659 = vstv %s282
        %v660 = vmul.f32 %v659, %v406
        %v661 = vadd.f32 %v658, %v660
        %v662 = vmax.f32 %v661, 0.0
        %v663 = vstv %s283
        %v664 = vmul.f32 %v663, %v334
        %v665 = vstv %s311
        %v666 = vadd.f32 %v664, %v665
        %v667 = vstv %s284
        %v668 = vmul.f32 %v667, %v342
        %v669 = vadd.f32 %v666, %v668
        %v670 = vstv %s285
        %v671 = vmul.f32 %v670, %v350
        %v672 = vadd.f32 %v669, %v671
        %v673 = vstv %s286
        %v674 = vmul.f32 %v673, %v358
        %v675 = vadd.f32 %v672, %v674
        %v676 = vstv %s287
        %v677 = vmul.f32 %v676, %v366
        %v678 = vadd.f32 %v675, %v677
        %v679 = vstv %s288
        %v680 = vmul.f32 %v679, %v374
        %v681 = vadd.f32 %v678, %v680
        %v682 = vstv %s289
        %v683 = vmul.f32 %v682, %v382
        %v684 = vadd.f32 %v681, %v683
        %v685 = vstv %s290
        %v686 = vmul.f32 %v685, %v390
        %v687 = vadd.f32 %v684, %v686
        %v688 = vstv %s291
        %v689 = vmul.f32 %v688, %v398
        %v690 = vadd.f32 %v687, %v689
        %v691 = vstv %s292
        %v692 = vmul.f32 %v691, %v406
        %v693 = vadd.f32 %v690, %v692
        %v694 = vmax.f32 %v693, 0.0
        %v695 = vstv %s293
        %v696 = vmul.f32 %v695, %v334
        %v697 = vstv %s312
        %v698 = vadd.f32 %v696, %v697
        %v699 = vstv %s294
        %v700 = vmul.f32 %v699, %v342
        %v701 = vadd.f32 %v698, %v700
        %v702 = vstv %s295
        %v703 = vmul.f32 %v702, %v350
        %v704 = vadd.f32 %v701, %v703
        %v705 = vstv %s296
        %v706 = vmul.f32 %v705, %v358
        %v707 = vadd.f32 %v704, %v706
        %v708 = vstv %s297
        %v709 = vmul.f32 %v708, %v366
        %v710 = vadd.f32 %v707, %v709
        %v711 = vstv %s298
        %v712 = vmul.f32 %v711, %v374
        %v713 = vadd.f32 %v710, %v712
        %v714 = vstv %s299
        %v715 = vmul.f32 %v714, %v382
        %v716 = vadd.f32 %v713, %v715
        %v717 = vstv %s300
        %v718 = vmul.f32 %v717, %v390
        %v719 = vadd.f32 %v716, %v718
        %v720 = vstv %s301
        %v721 = vmul.f32 %v720, %v398
        %v722 = vadd.f32 %v719, %v721
        %v723 = vstv %s302
        %v724 = vmul.f32 %v723, %v406
        %v725 = vadd.f32 %v722, %v724
        %v726 = vmax.f32 %v725, 0.0
        %v727 = vstv %s313
        %v728 = vmul.f32 %v727, %v438
        %v729 = vstv %s323
        %v730 = vadd.f32 %v728, %v729
        %v731 = vstv %s314
        %v732 = vmul.f32 %v731, %v470
        %v733 = vadd.f32 %v730, %v732
        %v734 = vstv %s315
        %v735 = vmul.f32 %v734, %v502
        %v736 = vadd.f32 %v733, %v735
        %v737 = vstv %s316
        %v738 = vmul.f32 %v737, %v534
        %v739 = vadd.f32 %v736, %v738
        %v740 = vstv %s317
        %v741 = vmul.f32 %v740, %v566
        %v742 = vadd.f32 %v739, %v741
        %v743 = vstv %s318
        %v744 = vmul.f32 %v743, %v598
        %v745 = vadd.f32 %v742, %v744
        %v746 = vstv %s319
        %v747 = vmul.f32 %v746, %v630
        %v748 = vadd.f32 %v745, %v747
        %v749 = vstv %s320
        %v750 = vmul.f32 %v749, %v662
        %v751 = vadd.f32 %v748, %v750
        %v752 = vstv %s321
        %v753 = vmul.f32 %v752, %v694
        %v754 = vadd.f32 %v751, %v753
        %v755 = vstv %s322
        %v756 = vmul.f32 %v755, %v726
        %v757 = vadd.f32 %v754, %v756
        %758 = vst [vmem:[%s172] sm:$0xff] %v757
        %s759 = sand.u32 %s75, 1
        %s760 = scalar_lea.sflag [#allocation4], %s759
        %s761 = sand.u32 %s75, 1
        %s762 = smul.addr %s761, 8
        %s763 = scalar_lea.vmem [#allocation7], %s762
        // Predicated region
        $region37: #{tpu_custom_call.1} parent=27 // pred_check
          %p764 = pneg %p85
        $region38: #{tpu_custom_call.1} parent=27 // pred_check_branch
          %766 = sbr.rel (%p764) target = $region40
        $region39: #{tpu_custom_call.1} parent=27 // pred_region
          %s768 = ssub.s32 128, 128
          %769 = vsyncadd %s760, %s768
          %s770 = smul.addr %s20, 128
          %s771 = scalar_lea.hbm %s2, %s770
          %s773 = sshll.u32 %s763, 4
          %s774 = int_to_ptr.vmem [resolvable:$true] %s773
          %776 = dma.vmem_to_hbm [thread:$0]  %s774, 128, %s771, %s760
        $region40: #{tpu_custom_call.1} parent=27 // pred_fallthru
          _
      $region28: #{tpu_custom_call.1} parent=5 // pred_fallthru
        _
      %p777 = scmp.le.s32.totalorder 2, %s15
      // Predicated region
      $region41: #{tpu_custom_call.1} parent=5 // pred_check
        %p778 = pneg %p777
      $region42: #{tpu_custom_call.1} parent=5 // pred_check_branch
        %780 = sbr.rel (%p778) target = $region44
      $region43: #{tpu_custom_call.1} parent=5 // pred_region
        %s781 = ssub.s32 %s15, 2
        // Predicated region
        $region45: #{tpu_custom_call.1} parent=43 // pred_check
          %p782 = pneg %p91
        $region46: #{tpu_custom_call.1} parent=43 // pred_check_branch
          %784 = sbr.rel (%p782) target = $region48
        $region47: #{tpu_custom_call.1} parent=43 // pred_region
          %s785 = sand.u32 %s76, 1
          %s786 = scalar_lea.sflag [#allocation4], %s785
          %s787 = sand.u32 %s76, 1
          %s788 = smul.addr %s787, 8
          %s789 = scalar_lea.vmem [#allocation7], %s788
          %790 = dma.done %s786, 128
        $region48: #{tpu_custom_call.1} parent=43 // pred_fallthru
          _
      $region44: #{tpu_custom_call.1} parent=5 // pred_fallthru
        _
    $region6: #{tpu_custom_call.1} parent=1 // loop_footer
      %s19 = sadd.s32 1, %s15
    $region7: #{tpu_custom_call.1} parent=1 // loop_footer_branch
      %14 = sbr.rel target = $region3
    $region8: #{tpu_custom_call.1} parent=1 // loop_exit
      _
    %791 = vsyncpa [#allocation3], 1
    %s792 = scalar_lea.sflag [#allocation3], 1
    %793 = vsyncpa %s792, 1
    %794 = vsyncpa [#allocation4], 1
    %s795 = scalar_lea.sflag [#allocation4], 1
    %796 = vsyncpa %s795, 1
    %797 = vsyncpa [#allocation5], 1
    %s798 = scalar_lea.sflag [#allocation5], 1
    %799 = vsyncpa %s798, 1

</llo_original>
